<compile_context>
chip_gen: v7x
topology: tpu7x:2x2x1
jax: 0.10.0
libtpu: 0.0.40
codegen_flags: <defaults>
</compile_context>

<pallas_src>
import jax
import jax.numpy as jnp
import numpy as np
from jax.experimental import pallas as pl
from jax.experimental.pallas import tpu as pltpu


def _round_up(n, m):
    return (n + m - 1) // m * m


# ---------------------------------------------------------------------------
# Fused kernel: 5 chained lane-dense matmuls (bf16 in / f32 acc) + bias/ReLU
# ---------------------------------------------------------------------------
def _net_fused_kernel(x_ref, w1_ref, b1_ref, w2_ref, b2_ref,
                      wf1_ref, bf1_ref, wf2_ref, bf2_ref, wf3_ref, bf3_ref,
                      o_ref):
    # conv1 as lowered matmul: (TB,128) @ (128,384) -> (TB,384), bias+ReLU
    h1 = jnp.dot(x_ref[...], w1_ref[...], preferred_element_type=jnp.float32)
    h1 = jnp.maximum(h1 + b1_ref[...], 0.0)

    # conv2 as lowered matmul: (TB,384) @ (384,576) -> (TB,576), bias+ReLU
    h2 = jnp.dot(h1.astype(jnp.bfloat16), w2_ref[...],
                 preferred_element_type=jnp.float32)
    h2 = jnp.maximum(h2 + b2_ref[...], 0.0)      # already in PyTorch (c,y,x) order

    # fc1: (TB,576) @ (576,512)
    a1 = jnp.dot(h2.astype(jnp.bfloat16), wf1_ref[...],
                 preferred_element_type=jnp.float32)
    a1 = jnp.maximum(a1 + bf1_ref[...], 0.0)

    # fc2 (padded to 128 lanes): (TB,512) @ (512,128)
    a2 = jnp.dot(a1.astype(jnp.bfloat16), wf2_ref[...],
                 preferred_element_type=jnp.float32)
    a2 = jnp.maximum(a2 + bf2_ref[...], 0.0)     # lanes 64..127 are exactly 0

    # fc3 (padded to 128 lanes): (TB,128) @ (128,128)
    a3 = jnp.dot(a2.astype(jnp.bfloat16), wf3_ref[...],
                 preferred_element_type=jnp.float32) + bf3_ref[...]
    o_ref[...] = a3.astype(o_ref.dtype)          # (TB,128) bf16, lane-dense store


# ---------------------------------------------------------------------------
# Wrapper: batch tiling + single pallas_call
# ---------------------------------------------------------------------------
def _net_forward_impl(params, x_nchw):
    n = x_nchw.shape[0]
    assert x_nchw.shape[1:] == (1, 10, 10), x_nchw.shape

    # lane-dense input: (N, 100) zero-padded to (N, 128), bf16
    x = x_nchw.reshape(n, 100).astype(jnp.bfloat16)
    x = jnp.pad(x, ((0, 0), (0, 28)))

    tb = min(512, _round_up(max(n, 1), 8))           # batch tile (multiple of 8)
    n_pad = _round_up(n, tb)
    # Guarantee >=2 grid steps when the batch permits, so both v7x TensorCores
    # get work under dimension_semantics=("parallel",).  No effect on v5e/v6e.
    if n_pad // tb < 2 and n_pad >= 16:
        tb = _round_up((n_pad + 1) // 2, 8)
        n_pad = _round_up(n, tb)
    if n_pad != n:
        x = jnp.pad(x, ((0, n_pad - n), (0, 0)))
    grid = (n_pad // tb,)

    out = pl.pallas_call(
        _net_fused_kernel,
        out_shape=jax.ShapeDtypeStruct((n_pad, 128), jnp.bfloat16),
        grid_spec=pltpu.PrefetchScalarGridSpec(
            num_scalar_prefetch=0,
            grid=grid,
            in_specs=[
                pl.BlockSpec((tb, 128), lambda i: (i, 0)),         # input tile
                pl.BlockSpec((128, 384), lambda i: (0, 0)),        # conv1 lowered w
                pl.BlockSpec((1, 384), lambda i: (0, 0)),          # conv1 bias
                pl.BlockSpec((384, 576), lambda i: (0, 0)),        # conv2 lowered w
                pl.BlockSpec((1, 576), lambda i: (0, 0)),          # conv2 bias
                pl.BlockSpec((576, 512), lambda i: (0, 0)),        # fc1 w
                pl.BlockSpec((1, 512), lambda i: (0, 0)),          # fc1 b
                pl.BlockSpec((512, 128), lambda i: (0, 0)),        # fc2 w (padded)
                pl.BlockSpec((1, 128), lambda i: (0, 0)),          # fc2 b (padded)
                pl.BlockSpec((128, 128), lambda i: (0, 0)),        # fc3 w (padded)
                pl.BlockSpec((1, 128), lambda i: (0, 0)),          # fc3 b (padded)
            ],
            out_specs=pl.BlockSpec((tb, 128), lambda i: (i, 0)),
        ),
        compiler_params=pltpu.CompilerParams(
            dimension_semantics=("parallel",),
            vmem_limit_bytes=32 << 20,   # actual usage is a few MiB; safe on v7x
        ),
    )(x,
      params["w1"], params["b1"], params["w2"], params["b2"],
      params["wf1"], params["bf1"], params["wf2"], params["bf2"],
      params["wf3"], params["bf3"])

    return out[:n, :2].astype(jnp.float32)


net_forward = jax.jit(_net_forward_impl)


# ---------------------------------------------------------------------------
# Parameters: PyTorch-shaped init + conversion to kernel layout
# ---------------------------------------------------------------------------
def init_torch_params(key):
    """Deterministic synthetic params in PyTorch layouts (uniform +-1/sqrt(fan_in))."""
    def uni(k, shape, fan_in):
        bound = 1.0 / (float(fan_in) ** 0.5)
        return jax.random.uniform(k, shape, jnp.float32, -bound, bound)

    ks = jax.random.split(key, 10)
    return dict(
        conv1_w=uni(ks[0], (6, 1, 3, 3), 9),
        conv1_b=uni(ks[1], (6,), 9),
        conv2_w=uni(ks[2], (16, 6, 3, 3), 54),
        conv2_b=uni(ks[3], (16,), 54),
        fc1_w=uni(ks[4], (512, 576), 576),     # PyTorch Linear: (out, in)
        fc1_b=uni(ks[5], (512,), 576),
        fc2_w=uni(ks[6], (64, 512), 512),
        fc2_b=uni(ks[7], (64,), 512),
        fc3_w=uni(ks[8], (2, 64), 64),
        fc3_b=uni(ks[9], (2,), 64),
    )


def prepare_params(p):
    """Convert PyTorch-layout params to the fused kernel's resident layouts.

    The convs are lowered to dense matrices by applying each conv to basis
    images (exact, by linearity); biases are broadcast separately.
    """
    dn = ("NCHW", "OIHW", "NCHW")

    # conv1 lowered: rows = input pixels (y,x) flatten of (10,10) padded to 128,
    #                cols = (c,y,x) flatten of (6,8,8)
    eye1 = jnp.eye(100, dtype=jnp.float32).reshape(100, 1, 10, 10)
    w1 = jax.lax.conv_general_dilated(eye1, p["conv1_w"], (1, 1), "VALID",
                                      dimension_numbers=dn)          # (100,6,8,8)
    w1 = jnp.pad(w1.reshape(100, 384), ((0, 28), (0, 0)))            # (128,384)
    b1 = jnp.broadcast_to(p["conv1_b"][:, None, None], (6, 8, 8)).reshape(1, 384)

    # conv2 lowered: rows = (c,y,x) flatten of (6,8,8),
    #                cols = (c,y,x) flatten of (16,6,6)  == PyTorch view order
    eye2 = jnp.eye(384, dtype=jnp.float32).reshape(384, 6, 8, 8)
    w2 = jax.lax.conv_general_dilated(eye2, p["conv2_w"], (1, 1), "VALID",
                                      dimension_numbers=dn)          # (384,16,6,6)
    w2 = w2.reshape(384, 576)
    b2 = jnp.broadcast_to(p["conv2_b"][:, None, None], (16, 6, 6)).reshape(1, 576)

    # fc layers (fc1 input order already matches PyTorch's (c,y,x) flatten)
    wf1 = p["fc1_w"].T                                               # (576,512)
    bf1 = p["fc1_b"].reshape(1, 512)
    wf2 = jnp.pad(p["fc2_w"].T, ((0, 0), (0, 64)))                   # (512,128)
    bf2 = jnp.pad(p["fc2_b"].reshape(1, 64), ((0, 0), (0, 64)))      # (1,128)
    wf3 = jnp.zeros((128, 128), jnp.float32).at[:64, :2].set(p["fc3_w"].T)
    bf3 = jnp.zeros((1, 128), jnp.float32).at[:, :2].set(p["fc3_b"].reshape(1, 2))

    bf16 = jnp.bfloat16
    return dict(
        w1=w1.astype(bf16), b1=b1, w2=w2.astype(bf16), b2=b2,
        wf1=wf1.astype(bf16), bf1=bf1,
        wf2=wf2.astype(bf16), bf2=bf2,
        wf3=wf3.astype(bf16), bf3=bf3,
    )


# ---------------------------------------------------------------------------
# Pure-JAX f32 reference (PyTorch semantics) for a sanity check
# ---------------------------------------------------------------------------
def _reference_forward(p, x_nchw):
    dn = ("NCHW", "OIHW", "NCHW")
    h = jax.lax.conv_general_dilated(x_nchw, p["conv1_w"], (1, 1), "VALID",
                                     dimension_numbers=dn)
    h = jax.nn.relu(h + p["conv1_b"][None, :, None, None])
    h = jax.lax.conv_general_dilated(h, p["conv2_w"], (1, 1), "VALID",
                                     dimension_numbers=dn)
    h = jax.nn.relu(h + p["conv2_b"][None, :, None, None])
    f = h.reshape(h.shape[0], 576)
    a = jax.nn.relu(f @ p["fc1_w"].T + p["fc1_b"])
    a = jax.nn.relu(a @ p["fc2_w"].T + p["fc2_b"])
    return a @ p["fc3_w"].T + p["fc3_b"]


if __name__ == "__main__":
    key = jax.random.PRNGKey(0)
    pkey, xkey = jax.random.split(key)
    torch_params = init_torch_params(pkey)
    params = prepare_params(torch_params)
    # Input must be 10x10 so that after two valid 3x3 convs spatial is 6x6.
    x = jax.random.normal(xkey, (2, 1, 10, 10), dtype=jnp.float32)
    out = net_forward(params, x)
    jax.block_until_ready(out)
    assert out.shape == (2, 2), out.shape
    assert bool(jnp.all(jnp.isfinite(out)))
    ref = _reference_forward(torch_params, x)
    assert np.max(np.abs(np.asarray(out) - np.asarray(ref))) < 0.1  # bf16 tolerance
    print("KERNEL_OK")
</pallas_src>

<mosaic_0001>
module attributes {stable_mosaic.version = 11 : i64} {
  func.func @_net_fused_kernel(%arg0: i32, %arg1: memref<8x128xbf16, #tpu.memory_space<vmem>>, %arg2: memref<128x384xbf16, #tpu.memory_space<vmem>>, %arg3: memref<1x384xf32, #tpu.memory_space<vmem>>, %arg4: memref<384x576xbf16, #tpu.memory_space<vmem>>, %arg5: memref<1x576xf32, #tpu.memory_space<vmem>>, %arg6: memref<576x512xbf16, #tpu.memory_space<vmem>>, %arg7: memref<1x512xf32, #tpu.memory_space<vmem>>, %arg8: memref<512x128xbf16, #tpu.memory_space<vmem>>, %arg9: memref<1x128xf32, #tpu.memory_space<vmem>>, %arg10: memref<128x128xbf16, #tpu.memory_space<vmem>>, %arg11: memref<1x128xf32, #tpu.memory_space<vmem>>, %arg12: memref<8x128xbf16, #tpu.memory_space<vmem>>) attributes {dimension_semantics = [#tpu.dimension_semantics<parallel>], iteration_bounds = array<i64: 1>, scalar_prefetch = 0 : i64, scratch_operands = 0 : i64, tpu.core_type = #tpu.core_type<tc>, window_params = [{transform_indices = @transform_0, window_bounds = array<i64: 8, 128>}, {pipeline_mode = #tpu.pipeline_mode<synchronous>, transform_indices = @transform_1, window_bounds = array<i64: 128, 384>}, {pipeline_mode = #tpu.pipeline_mode<synchronous>, transform_indices = @transform_2, window_bounds = array<i64: 1, 384>}, {pipeline_mode = #tpu.pipeline_mode<synchronous>, transform_indices = @transform_3, window_bounds = array<i64: 384, 576>}, {pipeline_mode = #tpu.pipeline_mode<synchronous>, transform_indices = @transform_4, window_bounds = array<i64: 1, 576>}, {pipeline_mode = #tpu.pipeline_mode<synchronous>, transform_indices = @transform_5, window_bounds = array<i64: 576, 512>}, {pipeline_mode = #tpu.pipeline_mode<synchronous>, transform_indices = @transform_6, window_bounds = array<i64: 1, 512>}, {pipeline_mode = #tpu.pipeline_mode<synchronous>, transform_indices = @transform_7, window_bounds = array<i64: 512, 128>}, {pipeline_mode = #tpu.pipeline_mode<synchronous>, transform_indices = @transform_8, window_bounds = array<i64: 1, 128>}, {pipeline_mode = #tpu.pipeline_mode<synchronous>, transform_indices = @transform_9, window_bounds = array<i64: 128, 128>}, {pipeline_mode = #tpu.pipeline_mode<synchronous>, transform_indices = @transform_10, window_bounds = array<i64: 1, 128>}, {transform_indices = @transform_11, window_bounds = array<i64: 8, 128>}]} {
    %c0 = arith.constant 0 : index
    %c0_0 = arith.constant 0 : index
    %0 = vector.load %arg1[%c0, %c0_0] : memref<8x128xbf16, #tpu.memory_space<vmem>>, vector<8x128xbf16>
    %c0_1 = arith.constant 0 : index
    %c0_2 = arith.constant 0 : index
    %1 = vector.load %arg2[%c0_1, %c0_2] : memref<128x384xbf16, #tpu.memory_space<vmem>>, vector<128x384xbf16>
    %cst = arith.constant dense<0.000000e+00> : vector<8x384xf32>
    %2 = tpu.matmul %0, %1, %cst {dimension_numbers = #tpu.dot_dimension_numbers<[1], [0], [0], [1], [0, 0, 1, 1], [], []>} : vector<8x128xbf16>, vector<128x384xbf16>, vector<8x384xf32> -> vector<8x384xf32>
    %c0_3 = arith.constant 0 : index
    %c0_4 = arith.constant 0 : index
    %3 = vector.load %arg3[%c0_3, %c0_4] : memref<1x384xf32, #tpu.memory_space<vmem>>, vector<1x384xf32>
    %4 = vector.broadcast %3 : vector<1x384xf32> to vector<8x384xf32>
    %5 = arith.addf %2, %4 : vector<8x384xf32>
    %cst_5 = arith.constant 0.000000e+00 : f32
    %6 = vector.broadcast %cst_5 : f32 to vector<8x384xf32>
    %7 = arith.maximumf %5, %6 : vector<8x384xf32>
    %8 = arith.truncf %7 : vector<8x384xf32> to vector<8x384xbf16>
    %c0_6 = arith.constant 0 : index
    %c0_7 = arith.constant 0 : index
    %9 = vector.load %arg4[%c0_6, %c0_7] : memref<384x576xbf16, #tpu.memory_space<vmem>>, vector<384x576xbf16>
    %cst_8 = arith.constant dense<0.000000e+00> : vector<8x576xf32>
    %10 = tpu.matmul %8, %9, %cst_8 {dimension_numbers = #tpu.dot_dimension_numbers<[1], [0], [0], [1], [0, 0, 1, 1], [], []>} : vector<8x384xbf16>, vector<384x576xbf16>, vector<8x576xf32> -> vector<8x576xf32>
    %c0_9 = arith.constant 0 : index
    %c0_10 = arith.constant 0 : index
    %11 = vector.load %arg5[%c0_9, %c0_10] : memref<1x576xf32, #tpu.memory_space<vmem>>, vector<1x576xf32>
    %12 = vector.broadcast %11 : vector<1x576xf32> to vector<8x576xf32>
    %13 = arith.addf %10, %12 : vector<8x576xf32>
    %cst_11 = arith.constant 0.000000e+00 : f32
    %14 = vector.broadcast %cst_11 : f32 to vector<8x576xf32>
    %15 = arith.maximumf %13, %14 : vector<8x576xf32>
    %16 = arith.truncf %15 : vector<8x576xf32> to vector<8x576xbf16>
    %c0_12 = arith.constant 0 : index
    %c0_13 = arith.constant 0 : index
    %17 = vector.load %arg6[%c0_12, %c0_13] : memref<576x512xbf16, #tpu.memory_space<vmem>>, vector<576x512xbf16>
    %cst_14 = arith.constant dense<0.000000e+00> : vector<8x512xf32>
    %18 = tpu.matmul %16, %17, %cst_14 {dimension_numbers = #tpu.dot_dimension_numbers<[1], [0], [0], [1], [0, 0, 1, 1], [], []>} : vector<8x576xbf16>, vector<576x512xbf16>, vector<8x512xf32> -> vector<8x512xf32>
    %c0_15 = arith.constant 0 : index
    %c0_16 = arith.constant 0 : index
    %19 = vector.load %arg7[%c0_15, %c0_16] : memref<1x512xf32, #tpu.memory_space<vmem>>, vector<1x512xf32>
    %20 = vector.broadcast %19 : vector<1x512xf32> to vector<8x512xf32>
    %21 = arith.addf %18, %20 : vector<8x512xf32>
    %cst_17 = arith.constant 0.000000e+00 : f32
    %22 = vector.broadcast %cst_17 : f32 to vector<8x512xf32>
    %23 = arith.maximumf %21, %22 : vector<8x512xf32>
    %24 = arith.truncf %23 : vector<8x512xf32> to vector<8x512xbf16>
    %c0_18 = arith.constant 0 : index
    %c0_19 = arith.constant 0 : index
    %25 = vector.load %arg8[%c0_18, %c0_19] : memref<512x128xbf16, #tpu.memory_space<vmem>>, vector<512x128xbf16>
    %cst_20 = arith.constant dense<0.000000e+00> : vector<8x128xf32>
    %26 = tpu.matmul %24, %25, %cst_20 {dimension_numbers = #tpu.dot_dimension_numbers<[1], [0], [0], [1], [0, 0, 1, 1], [], []>} : vector<8x512xbf16>, vector<512x128xbf16>, vector<8x128xf32> -> vector<8x128xf32>
    %c0_21 = arith.constant 0 : index
    %c0_22 = arith.constant 0 : index
    %27 = vector.load %arg9[%c0_21, %c0_22] : memref<1x128xf32, #tpu.memory_space<vmem>>, vector<1x128xf32>
    %28 = vector.broadcast %27 : vector<1x128xf32> to vector<8x128xf32>
    %29 = arith.addf %26, %28 : vector<8x128xf32>
    %cst_23 = arith.constant 0.000000e+00 : f32
    %30 = vector.broadcast %cst_23 : f32 to vector<8x128xf32>
    %31 = arith.maximumf %29, %30 : vector<8x128xf32>
    %32 = arith.truncf %31 : vector<8x128xf32> to vector<8x128xbf16>
    %c0_24 = arith.constant 0 : index
    %c0_25 = arith.constant 0 : index
    %33 = vector.load %arg10[%c0_24, %c0_25] : memref<128x128xbf16, #tpu.memory_space<vmem>>, vector<128x128xbf16>
    %cst_26 = arith.constant dense<0.000000e+00> : vector<8x128xf32>
    %34 = tpu.matmul %32, %33, %cst_26 {dimension_numbers = #tpu.dot_dimension_numbers<[1], [0], [0], [1], [0, 0, 1, 1], [], []>} : vector<8x128xbf16>, vector<128x128xbf16>, vector<8x128xf32> -> vector<8x128xf32>
    %c0_27 = arith.constant 0 : index
    %c0_28 = arith.constant 0 : index
    %35 = vector.load %arg11[%c0_27, %c0_28] : memref<1x128xf32, #tpu.memory_space<vmem>>, vector<1x128xf32>
    %36 = vector.broadcast %35 : vector<1x128xf32> to vector<8x128xf32>
    %37 = arith.addf %34, %36 : vector<8x128xf32>
    %38 = arith.truncf %37 : vector<8x128xf32> to vector<8x128xbf16>
    %c0_29 = arith.constant 0 : index
    %c0_30 = arith.constant 0 : index
    %39 = vector.load %arg12[%c0_29, %c0_30] : memref<8x128xbf16, #tpu.memory_space<vmem>>, vector<8x128xbf16>
    tpu.vector_store %arg12[%c0_29, %c0_30], %38 {strides = array<i32>} : memref<8x128xbf16, #tpu.memory_space<vmem>>, vector<8x128xbf16>,
    return
  }
  func.func @transform_0(%arg0: i32) -> (i32, i32) {
    %c0_i32 = arith.constant 0 : i32
    %c0_i32_0 = arith.constant 0 : i32
    return %arg0, %c0_i32 : i32, i32
  }
  func.func @transform_1(%arg0: i32) -> (i32, i32) {
    %c0_i32 = arith.constant 0 : i32
    %c0_i32_0 = arith.constant 0 : i32
    %c0_i32_1 = arith.constant 0 : i32
    return %c0_i32, %c0_i32_0 : i32, i32
  }
  func.func @transform_2(%arg0: i32) -> (i32, i32) {
    %c0_i32 = arith.constant 0 : i32
    %c0_i32_0 = arith.constant 0 : i32
    %c0_i32_1 = arith.constant 0 : i32
    return %c0_i32, %c0_i32_0 : i32, i32
  }
  func.func @transform_3(%arg0: i32) -> (i32, i32) {
    %c0_i32 = arith.constant 0 : i32
    %c0_i32_0 = arith.constant 0 : i32
    %c0_i32_1 = arith.constant 0 : i32
    return %c0_i32, %c0_i32_0 : i32, i32
  }
  func.func @transform_4(%arg0: i32) -> (i32, i32) {
    %c0_i32 = arith.constant 0 : i32
    %c0_i32_0 = arith.constant 0 : i32
    %c0_i32_1 = arith.constant 0 : i32
    return %c0_i32, %c0_i32_0 : i32, i32
  }
  func.func @transform_5(%arg0: i32) -> (i32, i32) {
    %c0_i32 = arith.constant 0 : i32
    %c0_i32_0 = arith.constant 0 : i32
    %c0_i32_1 = arith.constant 0 : i32
    return %c0_i32, %c0_i32_0 : i32, i32
  }
  func.func @transform_6(%arg0: i32) -> (i32, i32) {
    %c0_i32 = arith.constant 0 : i32
    %c0_i32_0 = arith.constant 0 : i32
    %c0_i32_1 = arith.constant 0 : i32
    return %c0_i32, %c0_i32_0 : i32, i32
  }
  func.func @transform_7(%arg0: i32) -> (i32, i32) {
    %c0_i32 = arith.constant 0 : i32
    %c0_i32_0 = arith.constant 0 : i32
    %c0_i32_1 = arith.constant 0 : i32
    return %c0_i32, %c0_i32_0 : i32, i32
  }
  func.func @transform_8(%arg0: i32) -> (i32, i32) {
    %c0_i32 = arith.constant 0 : i32
    %c0_i32_0 = arith.constant 0 : i32
    %c0_i32_1 = arith.constant 0 : i32
    return %c0_i32, %c0_i32_0 : i32, i32
  }
  func.func @transform_9(%arg0: i32) -> (i32, i32) {
    %c0_i32 = arith.constant 0 : i32
    %c0_i32_0 = arith.constant 0 : i32
    %c0_i32_1 = arith.constant 0 : i32
    return %c0_i32, %c0_i32_0 : i32, i32
  }
  func.func @transform_10(%arg0: i32) -> (i32, i32) {
    %c0_i32 = arith.constant 0 : i32
    %c0_i32_0 = arith.constant 0 : i32
    %c0_i32_1 = arith.constant 0 : i32
    return %c0_i32, %c0_i32_0 : i32, i32
  }
  func.func @transform_11(%arg0: i32) -> (i32, i32) {
    %c0_i32 = arith.constant 0 : i32
    %c0_i32_0 = arith.constant 0 : i32
    return %arg0, %c0_i32 : i32, i32
  }
}

</mosaic_0001>

<llo_original>
// kernel: _net_forward_impl.1
$region0: #{_net_forward_impl.1}
  #allocation0 [shape = 'u32[]', space=smem, size = 0x4, offset = 0x4, fixed_abs, tag = 'smem constant byte address 0x4 - core index']
  #allocation1 [shape = 'u32[144,128]{1,0:T(1,128)}', space=vmem, size = 0x12000, scoped, tag = 'internal scratch']
  %s0 = inlined_call_operand.vmem [shape: bf16[8,128], index: 0, kind: input, shape index: {}]
  %s1 = inlined_call_operand.vmem [shape: bf16[128,384], index: 1, kind: input, shape index: {}]
  %s2 = inlined_call_operand.vmem [shape: f32[1,384], index: 2, kind: input, shape index: {}]
  %s3 = inlined_call_operand.vmem [shape: bf16[384,576], index: 3, kind: input, shape index: {}]
  %s4 = inlined_call_operand.vmem [shape: f32[1,576], index: 4, kind: input, shape index: {}]
  %s5 = inlined_call_operand.vmem [shape: bf16[576,512], index: 5, kind: input, shape index: {}]
  %s6 = inlined_call_operand.vmem [shape: f32[1,512], index: 6, kind: input, shape index: {}]
  %s7 = inlined_call_operand.vmem [shape: bf16[512,128], index: 7, kind: input, shape index: {}]
  %s8 = inlined_call_operand.vmem [shape: f32[1,128], index: 8, kind: input, shape index: {}]
  %s9 = inlined_call_operand.vmem [shape: bf16[128,128], index: 9, kind: input, shape index: {}]
  %s10 = inlined_call_operand.vmem [shape: f32[1,128], index: 10, kind: input, shape index: {}]
  %s11 = inlined_call_operand.vmem [shape: bf16[8,128], index: 11, kind: output, shape index: {}]
  %s12 = sld [smem:[#allocation0]]
  $region54: #{_net_forward_impl.1} parent=0
    _
  %s14 = ssub.s32 1, %s12
  %s15 = scalar_select 0, %s14, %s12
  // Predicated region
  $region2: #{_net_forward_impl.1} parent=0 // pred_check
    _
  $region3: #{_net_forward_impl.1} parent=0 // pred_check_branch
    %17 = sbr.rel (0) target = $region5
  $region4: #{_net_forward_impl.1} parent=0 // pred_region
    _
  $region5: #{_net_forward_impl.1} parent=0 // pred_fallthru
    _
  // Predicated region
  $region6: #{_net_forward_impl.1} parent=0 // pred_check
    _
  $region7: #{_net_forward_impl.1} parent=0 // pred_check_branch
    %19 = sbr.rel (0) target = $region9
  $region8: #{_net_forward_impl.1} parent=0 // pred_region
    _
  $region9: #{_net_forward_impl.1} parent=0 // pred_fallthru
    _
  // Predicated region
  $region10: #{_net_forward_impl.1} parent=0 // pred_check
    _
  $region11: #{_net_forward_impl.1} parent=0 // pred_check_branch
    %21 = sbr.rel (0) target = $region13
  $region12: #{_net_forward_impl.1} parent=0 // pred_region
    _
  $region13: #{_net_forward_impl.1} parent=0 // pred_fallthru
    _
  // Predicated region
  $region14: #{_net_forward_impl.1} parent=0 // pred_check
    _
  $region15: #{_net_forward_impl.1} parent=0 // pred_check_branch
    %23 = sbr.rel (0) target = $region17
  $region16: #{_net_forward_impl.1} parent=0 // pred_region
    _
  $region17: #{_net_forward_impl.1} parent=0 // pred_fallthru
    _
  // Predicated region
  $region18: #{_net_forward_impl.1} parent=0 // pred_check
    _
  $region19: #{_net_forward_impl.1} parent=0 // pred_check_branch
    %25 = sbr.rel (0) target = $region21
  $region20: #{_net_forward_impl.1} parent=0 // pred_region
    _
  $region21: #{_net_forward_impl.1} parent=0 // pred_fallthru
    _
  // Predicated region
  $region22: #{_net_forward_impl.1} parent=0 // pred_check
    _
  $region23: #{_net_forward_impl.1} parent=0 // pred_check_branch
    %27 = sbr.rel (0) target = $region25
  $region24: #{_net_forward_impl.1} parent=0 // pred_region
    _
  $region25: #{_net_forward_impl.1} parent=0 // pred_fallthru
    _
  // Predicated region
  $region26: #{_net_forward_impl.1} parent=0 // pred_check
    _
  $region27: #{_net_forward_impl.1} parent=0 // pred_check_branch
    %29 = sbr.rel (0) target = $region29
  $region28: #{_net_forward_impl.1} parent=0 // pred_region
    _
  $region29: #{_net_forward_impl.1} parent=0 // pred_fallthru
    _
  // Predicated region
  $region30: #{_net_forward_impl.1} parent=0 // pred_check
    _
  $region31: #{_net_forward_impl.1} parent=0 // pred_check_branch
    %31 = sbr.rel (0) target = $region33
  $region32: #{_net_forward_impl.1} parent=0 // pred_region
    _
  $region33: #{_net_forward_impl.1} parent=0 // pred_fallthru
    _
  // Predicated region
  $region34: #{_net_forward_impl.1} parent=0 // pred_check
    _
  $region35: #{_net_forward_impl.1} parent=0 // pred_check_branch
    %33 = sbr.rel (0) target = $region37
  $region36: #{_net_forward_impl.1} parent=0 // pred_region
    _
  $region37: #{_net_forward_impl.1} parent=0 // pred_fallthru
    _
  // Predicated region
  $region38: #{_net_forward_impl.1} parent=0 // pred_check
    _
  $region39: #{_net_forward_impl.1} parent=0 // pred_check_branch
    %35 = sbr.rel (0) target = $region41
  $region40: #{_net_forward_impl.1} parent=0 // pred_region
    _
  $region41: #{_net_forward_impl.1} parent=0 // pred_fallthru
    _
  // Predicated region
  $region42: #{_net_forward_impl.1} parent=0 // pred_check
    _
  $region43: #{_net_forward_impl.1} parent=0 // pred_check_branch
    %37 = sbr.rel (0) target = $region45
  $region44: #{_net_forward_impl.1} parent=0 // pred_region
    _
  $region45: #{_net_forward_impl.1} parent=0 // pred_fallthru
    _
  %v39 = vld [vmem:[%s0] sm:$0xf]
  %v40 = vld [vmem:[%s1] sm:$0xff]
  %v41 = vld [vmem:[%s1 + $0x8] sm:$0xf]
  %v42 = vld [vmem:[%s1 + $0xc] sm:$0xff]
  %v43 = vld [vmem:[%s1 + $0x14] sm:$0xf]
  %v44 = vld [vmem:[%s1 + $0x18] sm:$0xff]
  %v45 = vld [vmem:[%s1 + $0x20] sm:$0xf]
  %v46 = vld [vmem:[%s1 + $0x24] sm:$0xff]
  %v47 = vld [vmem:[%s1 + $0x2c] sm:$0xf]
  %v48 = vld [vmem:[%s1 + $0x30] sm:$0xff]
  %v49 = vld [vmem:[%s1 + $0x38] sm:$0xf]
  %v50 = vld [vmem:[%s1 + $0x3c] sm:$0xff]
  %v51 = vld [vmem:[%s1 + $0x44] sm:$0xf]
  %v52 = vld [vmem:[%s1 + $0x48] sm:$0xff]
  %v53 = vld [vmem:[%s1 + $0x50] sm:$0xf]
  %v54 = vld [vmem:[%s1 + $0x54] sm:$0xff]
  %v55 = vld [vmem:[%s1 + $0x5c] sm:$0xf]
  %v56 = vld [vmem:[%s1 + $0x60] sm:$0xff]
  %v57 = vld [vmem:[%s1 + $0x68] sm:$0xf]
  %v58 = vld [vmem:[%s1 + $0x6c] sm:$0xff]
  %v59 = vld [vmem:[%s1 + $0x74] sm:$0xf]
  %v60 = vld [vmem:[%s1 + $0x78] sm:$0xff]
  %v61 = vld [vmem:[%s1 + $0x80] sm:$0xf]
  %v62 = vld [vmem:[%s1 + $0x84] sm:$0xff]
  %v63 = vld [vmem:[%s1 + $0x8c] sm:$0xf]
  %v64 = vld [vmem:[%s1 + $0x90] sm:$0xff]
  %v65 = vld [vmem:[%s1 + $0x98] sm:$0xf]
  %v66 = vld [vmem:[%s1 + $0x9c] sm:$0xff]
  %v67 = vld [vmem:[%s1 + $0xa4] sm:$0xf]
  %v68 = vld [vmem:[%s1 + $0xa8] sm:$0xff]
  %v69 = vld [vmem:[%s1 + $0xb0] sm:$0xf]
  %v70 = vld [vmem:[%s1 + $0xb4] sm:$0xff]
  %v71 = vld [vmem:[%s1 + $0xbc] sm:$0xf]
  %v72 = vld [vmem:[%s2] sm:$0x7]
  %v74 = vlaneseq
  %v75 = vshrl.u32 %v74, 7
  %v76 = vsub.s32 0, %v75
  %v77 = vrot.slane %v72, %v76
  %v78 = vlaneseq
  %v79 = vshrl.u32 %v78, 7
  %v80 = vsub.s32 1, %v79
  %v81 = vrot.slane %v72, %v80
  %v82 = vlaneseq
  %v83 = vshrl.u32 %v82, 7
  %v84 = vsub.s32 2, %v83
  %v85 = vrot.slane %v72, %v84
  %v121 = vunpack.c.l.b16 %v40
  %v122 = vunpack.c.h.b16 %v40
  %v123 = vunpack.c.l.b16 %v41
  %v124 = vunpack.c.l.b16 %v42
  %v125 = vunpack.c.h.b16 %v42
  %v126 = vunpack.c.l.b16 %v43
  %v127 = vunpack.c.l.b16 %v44
  %v128 = vunpack.c.h.b16 %v44
  %v129 = vunpack.c.l.b16 %v45
  %v130 = vunpack.c.l.b16 %v46
  %v131 = vunpack.c.h.b16 %v46
  %v132 = vunpack.c.l.b16 %v47
  %v133 = vunpack.c.l.b16 %v48
  %v134 = vunpack.c.h.b16 %v48
  %v135 = vunpack.c.l.b16 %v49
  %v136 = vunpack.c.l.b16 %v50
  %v137 = vunpack.c.h.b16 %v50
  %v138 = vunpack.c.l.b16 %v51
  %v139 = vunpack.c.l.b16 %v52
  %v140 = vunpack.c.h.b16 %v52
  %v141 = vunpack.c.l.b16 %v53
  %v142 = vunpack.c.l.b16 %v54
  %v143 = vunpack.c.h.b16 %v54
  %v144 = vunpack.c.l.b16 %v55
  %v145 = vunpack.c.l.b16 %v56
  %v146 = vunpack.c.h.b16 %v56
  %v147 = vunpack.c.l.b16 %v57
  %v148 = vunpack.c.l.b16 %v58
  %v149 = vunpack.c.h.b16 %v58
  %v150 = vunpack.c.l.b16 %v59
  %v151 = vunpack.c.l.b16 %v60
  %v152 = vunpack.c.h.b16 %v60
  %v153 = vunpack.c.l.b16 %v61
  %v154 = vunpack.c.l.b16 %v62
  %v155 = vunpack.c.h.b16 %v62
  %v156 = vunpack.c.l.b16 %v63
  %v157 = vunpack.c.l.b16 %v64
  %v158 = vunpack.c.h.b16 %v64
  %v159 = vunpack.c.l.b16 %v65
  %v160 = vunpack.c.l.b16 %v66
  %v161 = vunpack.c.h.b16 %v66
  %v162 = vunpack.c.l.b16 %v67
  %v163 = vunpack.c.l.b16 %v68
  %v164 = vunpack.c.h.b16 %v68
  %v165 = vunpack.c.l.b16 %v69
  %v166 = vunpack.c.l.b16 %v70
  %v167 = vunpack.c.h.b16 %v70
  %v168 = vunpack.c.l.b16 %v71
  %v169 = vpack.c.b16 %v124, %v121
  %v170 = vpack.c.b16 %v125, %v122
  %v171 = vpack.c.b16 %v126, %v123
  %v172 = vpack.c.b16 %v130, %v127
  %v173 = vpack.c.b16 %v131, %v128
  %v174 = vpack.c.b16 %v132, %v129
  %v175 = vpack.c.b16 %v136, %v133
  %v176 = vpack.c.b16 %v137, %v134
  %v177 = vpack.c.b16 %v138, %v135
  %v178 = vpack.c.b16 %v142, %v139
  %v179 = vpack.c.b16 %v143, %v140
  %v180 = vpack.c.b16 %v144, %v141
  %v181 = vpack.c.b16 %v148, %v145
  %v182 = vpack.c.b16 %v149, %v146
  %v183 = vpack.c.b16 %v150, %v147
  %v184 = vpack.c.b16 %v154, %v151
  %v185 = vpack.c.b16 %v155, %v152
  %v186 = vpack.c.b16 %v156, %v153
  %v187 = vpack.c.b16 %v160, %v157
  %v188 = vpack.c.b16 %v161, %v158
  %v189 = vpack.c.b16 %v162, %v159
  %v190 = vpack.c.b16 %v166, %v163
  %v191 = vpack.c.b16 %v167, %v164
  %v192 = vpack.c.b16 %v168, %v165
  %217 = vmatprep.subr.bf16.mxu0 %v170
  %218 = vmatpush1.bf16.msra.mxu0 %v169
  %219 = vmatprep.subr.bf16.mxu0 %v173
  %220 = vmatpush1.bf16.msra.mxu0 %v172
  %221 = vmatprep.subr.bf16.mxu0 %v176
  %222 = vmatpush1.bf16.msra.mxu0 %v175
  %223 = vmatprep.subr.bf16.mxu0 %v179
  %224 = vmatpush1.bf16.msra.mxu0 %v178
  %225 = vmatprep.subr.bf16.mxu0 %v182
  %226 = vmatpush1.bf16.msra.mxu0 %v181
  %227 = vmatprep.subr.bf16.mxu0 %v185
  %228 = vmatpush1.bf16.msra.mxu0 %v184
  %229 = vmatprep.subr.bf16.mxu0 %v188
  %230 = vmatpush1.bf16.msra.mxu0 %v187
  %231 = vmatprep.subr.bf16.mxu0 %v191
  %232 = vmatpush1.bf16.msra.mxu0 %v190
  %233 = vmatprep.subr.bf16.mxu0 0
  %234 = vmatpush1.bf16.msra.mxu0 0
  %235 = vmatprep.subr.bf16.mxu0 0
  %236 = vmatpush1.bf16.msra.mxu0 0
  %237 = vmatprep.subr.bf16.mxu0 0
  %238 = vmatpush1.bf16.msra.mxu0 0
  %239 = vmatprep.subr.bf16.mxu0 0
  %240 = vmatpush1.bf16.msra.mxu0 0
  %241 = vmatprep.subr.bf16.mxu0 0
  %242 = vmatpush1.bf16.msra.mxu0 0
  %243 = vmatprep.subr.bf16.mxu0 0
  %244 = vmatpush1.bf16.msra.mxu0 0
  %245 = vmatprep.subr.bf16.mxu0 0
  %246 = vmatpush1.bf16.msra.mxu0 0
  %247 = vmatprep.subr.bf16.mxu0 0
  %248 = vmatpush1.bf16.msra.mxu0 0
  %249 = vmatprep.mubr.bf16.mxu0 0
  %250 = vmatmul.mubr.bf16.gmra.mrb[0].mxu0 %v39
  %v251 = vpop.f32.mrb[0].mxu0
  %v252 = vadd.f32 %v77, %v251
  %v253 = vpop.f32.mrb[0].mxu0
  %v254 = vadd.f32 %v81, %v253
  %v255 = vpop.f32.mrb[0].mxu0
  %v256 = vpop.f32.mrb[0].mxu0
  %257 = vdwg.mxu0
  %258 = vmatprep.subr.bf16.mxu0 0
  %259 = vmatpush1.bf16.msra.mxu0 %v171
  %260 = vmatprep.subr.bf16.mxu0 0
  %261 = vmatpush1.bf16.msra.mxu0 %v174
  %262 = vmatprep.subr.bf16.mxu0 0
  %263 = vmatpush1.bf16.msra.mxu0 %v177
  %264 = vmatprep.subr.bf16.mxu0 0
  %265 = vmatpush1.bf16.msra.mxu0 %v180
  %266 = vmatprep.subr.bf16.mxu0 0
  %267 = vmatpush1.bf16.msra.mxu0 %v183
  %268 = vmatprep.subr.bf16.mxu0 0
  %269 = vmatpush1.bf16.msra.mxu0 %v186
  %270 = vmatprep.subr.bf16.mxu0 0
  %271 = vmatpush1.bf16.msra.mxu0 %v189
  %272 = vmatprep.subr.bf16.mxu0 0
  %273 = vmatpush1.bf16.msra.mxu0 %v192
  %274 = vmatprep.subr.bf16.mxu0 0
  %275 = vmatpush1.bf16.msra.mxu0 0
  %276 = vmatprep.subr.bf16.mxu0 0
  %277 = vmatpush1.bf16.msra.mxu0 0
  %278 = vmatprep.subr.bf16.mxu0 0
  %279 = vmatpush1.bf16.msra.mxu0 0
  %280 = vmatprep.subr.bf16.mxu0 0
  %281 = vmatpush1.bf16.msra.mxu0 0
  %282 = vmatprep.subr.bf16.mxu0 0
  %283 = vmatpush1.bf16.msra.mxu0 0
  %284 = vmatprep.subr.bf16.mxu0 0
  %285 = vmatpush1.bf16.msra.mxu0 0
  %286 = vmatprep.subr.bf16.mxu0 0
  %287 = vmatpush1.bf16.msra.mxu0 0
  %288 = vmatprep.subr.bf16.mxu0 0
  %289 = vmatpush1.bf16.msra.mxu0 0
  %290 = vmatprep.mubr.bf16.mxu0 0
  %291 = vmatmul.mubr.bf16.gmra.mrb[0].mxu0 %v39
  %v292 = vpop.f32.mrb[0].mxu0
  %v293 = vadd.f32 %v85, %v292
  %v294 = vpop.f32.mrb[0].mxu0
  %v295 = vpop.f32.mrb[0].mxu0
  %v296 = vpop.f32.mrb[0].mxu0
  %297 = vdwg.mxu0
  %v298 = vmax.f32 %v252, 0.0
  %v299 = vmax.f32 %v254, 0.0
  %v300 = vmax.f32 %v293, 0.0
  %v301 = vpack.c.bf16 %v298, %v298
  %v302 = vpack.c.bf16 %v299, %v299
  %v303 = vpack.c.bf16 %v300, %v300
  %v304 = vld [vmem:[%s3] sm:$0xff]
  %v305 = vld [vmem:[%s3 + $0x8] sm:$0xff]
  %v306 = vld [vmem:[%s3 + $0x10] sm:$0xf]
  %v307 = vld [vmem:[%s3 + $0x14] sm:$0xff]
  %v308 = vld [vmem:[%s3 + $0x1c] sm:$0xff]
  %v309 = vld [vmem:[%s3 + $0x24] sm:$0xf]
  %v310 = vld [vmem:[%s3 + $0x28] sm:$0xff]
  %v311 = vld [vmem:[%s3 + $0x30] sm:$0xff]
  %v312 = vld [vmem:[%s3 + $0x38] sm:$0xf]
  %v313 = vld [vmem:[%s3 + $0x3c] sm:$0xff]
  %v314 = vld [vmem:[%s3 + $0x44] sm:$0xff]
  %v315 = vld [vmem:[%s3 + $0x4c] sm:$0xf]
  %v316 = vld [vmem:[%s3 + $0x50] sm:$0xff]
  %v317 = vld [vmem:[%s3 + $0x58] sm:$0xff]
  %v318 = vld [vmem:[%s3 + $0x60] sm:$0xf]
  %v319 = vld [vmem:[%s3 + $0x64] sm:$0xff]
  %v320 = vld [vmem:[%s3 + $0x6c] sm:$0xff]
  %v321 = vld [vmem:[%s3 + $0x74] sm:$0xf]
  %v322 = vld [vmem:[%s3 + $0x78] sm:$0xff]
  %v323 = vld [vmem:[%s3 + $0x80] sm:$0xff]
  %v324 = vld [vmem:[%s3 + $0x88] sm:$0xf]
  %v325 = vld [vmem:[%s3 + $0x8c] sm:$0xff]
  %v326 = vld [vmem:[%s3 + $0x94] sm:$0xff]
  %v327 = vld [vmem:[%s3 + $0x9c] sm:$0xf]
  %v328 = vld [vmem:[%s3 + $0xa0] sm:$0xff]
  %v329 = vld [vmem:[%s3 + $0xa8] sm:$0xff]
  %v330 = vld [vmem:[%s3 + $0xb0] sm:$0xf]
  %v331 = vld [vmem:[%s3 + $0xb4] sm:$0xff]
  %v332 = vld [vmem:[%s3 + $0xbc] sm:$0xff]
  %v333 = vld [vmem:[%s3 + $0xc4] sm:$0xf]
  %v334 = vld [vmem:[%s3 + $0xc8] sm:$0xff]
  %v335 = vld [vmem:[%s3 + $0xd0] sm:$0xff]
  %v336 = vld [vmem:[%s3 + $0xd8] sm:$0xf]
  %v337 = vld [vmem:[%s3 + $0xdc] sm:$0xff]
  %v338 = vld [vmem:[%s3 + $0xe4] sm:$0xff]
  %v339 = vld [vmem:[%s3 + $0xec] sm:$0xf]
  %v340 = vld [vmem:[%s3 + $0xf0] sm:$0xff]
  %v341 = vld [vmem:[%s3 + $0xf8] sm:$0xff]
  %v342 = vld [vmem:[%s3 + $0x100] sm:$0xf]
  %v343 = vld [vmem:[%s3 + $0x104] sm:$0xff]
  %v344 = vld [vmem:[%s3 + $0x10c] sm:$0xff]
  %v345 = vld [vmem:[%s3 + $0x114] sm:$0xf]
  %v346 = vld [vmem:[%s3 + $0x118] sm:$0xff]
  %v347 = vld [vmem:[%s3 + $0x120] sm:$0xff]
  %v348 = vld [vmem:[%s3 + $0x128] sm:$0xf]
  %v349 = vld [vmem:[%s3 + $0x12c] sm:$0xff]
  %v350 = vld [vmem:[%s3 + $0x134] sm:$0xff]
  %v351 = vld [vmem:[%s3 + $0x13c] sm:$0xf]
  %v352 = vld [vmem:[%s3 + $0x140] sm:$0xff]
  %v353 = vld [vmem:[%s3 + $0x148] sm:$0xff]
  %v354 = vld [vmem:[%s3 + $0x150] sm:$0xf]
  %v355 = vld [vmem:[%s3 + $0x154] sm:$0xff]
  %v356 = vld [vmem:[%s3 + $0x15c] sm:$0xff]
  %v357 = vld [vmem:[%s3 + $0x164] sm:$0xf]
  %v358 = vld [vmem:[%s3 + $0x168] sm:$0xff]
  %v359 = vld [vmem:[%s3 + $0x170] sm:$0xff]
  %v360 = vld [vmem:[%s3 + $0x178] sm:$0xf]
  %v361 = vld [vmem:[%s3 + $0x17c] sm:$0xff]
  %v362 = vld [vmem:[%s3 + $0x184] sm:$0xff]
  %v363 = vld [vmem:[%s3 + $0x18c] sm:$0xf]
  %v364 = vld [vmem:[%s3 + $0x190] sm:$0xff]
  %v365 = vld [vmem:[%s3 + $0x198] sm:$0xff]
  %v366 = vld [vmem:[%s3 + $0x1a0] sm:$0xf]
  %v367 = vld [vmem:[%s3 + $0x1a4] sm:$0xff]
  %v368 = vld [vmem:[%s3 + $0x1ac] sm:$0xff]
  %v369 = vld [vmem:[%s3 + $0x1b4] sm:$0xf]
  %v370 = vld [vmem:[%s3 + $0x1b8] sm:$0xff]
  %v371 = vld [vmem:[%s3 + $0x1c0] sm:$0xff]
  %v372 = vld [vmem:[%s3 + $0x1c8] sm:$0xf]
  %v373 = vld [vmem:[%s3 + $0x1cc] sm:$0xff]
  %v374 = vld [vmem:[%s3 + $0x1d4] sm:$0xff]
  %v375 = vld [vmem:[%s3 + $0x1dc] sm:$0xf]
  %v376 = vld [vmem:[%s3 + $0x1e0] sm:$0xff]
  %v377 = vld [vmem:[%s3 + $0x1e8] sm:$0xff]
  %v378 = vld [vmem:[%s3 + $0x1f0] sm:$0xf]
  %v379 = vld [vmem:[%s3 + $0x1f4] sm:$0xff]
  %v380 = vld [vmem:[%s3 + $0x1fc] sm:$0xff]
  %v381 = vld [vmem:[%s3 + $0x204] sm:$0xf]
  %v382 = vld [vmem:[%s3 + $0x208] sm:$0xff]
  %v383 = vld [vmem:[%s3 + $0x210] sm:$0xff]
  %v384 = vld [vmem:[%s3 + $0x218] sm:$0xf]
  %v385 = vld [vmem:[%s3 + $0x21c] sm:$0xff]
  %v386 = vld [vmem:[%s3 + $0x224] sm:$0xff]
  %v387 = vld [vmem:[%s3 + $0x22c] sm:$0xf]
  %v388 = vld [vmem:[%s3 + $0x230] sm:$0xff]
  %v389 = vld [vmem:[%s3 + $0x238] sm:$0xff]
  %v390 = vld [vmem:[%s3 + $0x240] sm:$0xf]
  %v391 = vld [vmem:[%s3 + $0x244] sm:$0xff]
  %v392 = vld [vmem:[%s3 + $0x24c] sm:$0xff]
  %v393 = vld [vmem:[%s3 + $0x254] sm:$0xf]
  %v394 = vld [vmem:[%s3 + $0x258] sm:$0xff]
  %v395 = vld [vmem:[%s3 + $0x260] sm:$0xff]
  %v396 = vld [vmem:[%s3 + $0x268] sm:$0xf]
  %v397 = vld [vmem:[%s3 + $0x26c] sm:$0xff]
  %v398 = vld [vmem:[%s3 + $0x274] sm:$0xff]
  %v399 = vld [vmem:[%s3 + $0x27c] sm:$0xf]
  %v400 = vld [vmem:[%s3 + $0x280] sm:$0xff]
  %v401 = vld [vmem:[%s3 + $0x288] sm:$0xff]
  %v402 = vld [vmem:[%s3 + $0x290] sm:$0xf]
  %v403 = vld [vmem:[%s3 + $0x294] sm:$0xff]
  %v404 = vld [vmem:[%s3 + $0x29c] sm:$0xff]
  %v405 = vld [vmem:[%s3 + $0x2a4] sm:$0xf]
  %v406 = vld [vmem:[%s3 + $0x2a8] sm:$0xff]
  %v407 = vld [vmem:[%s3 + $0x2b0] sm:$0xff]
  %v408 = vld [vmem:[%s3 + $0x2b8] sm:$0xf]
  %v409 = vld [vmem:[%s3 + $0x2bc] sm:$0xff]
  %v410 = vld [vmem:[%s3 + $0x2c4] sm:$0xff]
  %v411 = vld [vmem:[%s3 + $0x2cc] sm:$0xf]
  %v412 = vld [vmem:[%s3 + $0x2d0] sm:$0xff]
  %v413 = vld [vmem:[%s3 + $0x2d8] sm:$0xff]
  %v414 = vld [vmem:[%s3 + $0x2e0] sm:$0xf]
  %v415 = vld [vmem:[%s3 + $0x2e4] sm:$0xff]
  %v416 = vld [vmem:[%s3 + $0x2ec] sm:$0xff]
  %v417 = vld [vmem:[%s3 + $0x2f4] sm:$0xf]
  %v418 = vld [vmem:[%s3 + $0x2f8] sm:$0xff]
  %v419 = vld [vmem:[%s3 + $0x300] sm:$0xff]
  %v420 = vld [vmem:[%s3 + $0x308] sm:$0xf]
  %v421 = vld [vmem:[%s3 + $0x30c] sm:$0xff]
  %v422 = vld [vmem:[%s3 + $0x314] sm:$0xff]
  %v423 = vld [vmem:[%s3 + $0x31c] sm:$0xf]
  %v424 = vld [vmem:[%s3 + $0x320] sm:$0xff]
  %v425 = vld [vmem:[%s3 + $0x328] sm:$0xff]
  %v426 = vld [vmem:[%s3 + $0x330] sm:$0xf]
  %v427 = vld [vmem:[%s3 + $0x334] sm:$0xff]
  %v428 = vld [vmem:[%s3 + $0x33c] sm:$0xff]
  %v429 = vld [vmem:[%s3 + $0x344] sm:$0xf]
  %v430 = vld [vmem:[%s3 + $0x348] sm:$0xff]
  %v431 = vld [vmem:[%s3 + $0x350] sm:$0xff]
  %v432 = vld [vmem:[%s3 + $0x358] sm:$0xf]
  %v433 = vld [vmem:[%s3 + $0x35c] sm:$0xff]
  %v434 = vld [vmem:[%s3 + $0x364] sm:$0xff]
  %v435 = vld [vmem:[%s3 + $0x36c] sm:$0xf]
  %v436 = vld [vmem:[%s3 + $0x370] sm:$0xff]
  %v437 = vld [vmem:[%s3 + $0x378] sm:$0xff]
  %v438 = vld [vmem:[%s3 + $0x380] sm:$0xf]
  %v439 = vld [vmem:[%s3 + $0x384] sm:$0xff]
  %v440 = vld [vmem:[%s3 + $0x38c] sm:$0xff]
  %v441 = vld [vmem:[%s3 + $0x394] sm:$0xf]
  %v442 = vld [vmem:[%s3 + $0x398] sm:$0xff]
  %v443 = vld [vmem:[%s3 + $0x3a0] sm:$0xff]
  %v444 = vld [vmem:[%s3 + $0x3a8] sm:$0xf]
  %v445 = vld [vmem:[%s3 + $0x3ac] sm:$0xff]
  %v446 = vld [vmem:[%s3 + $0x3b4] sm:$0xff]
  %v447 = vld [vmem:[%s3 + $0x3bc] sm:$0xf]
  %v448 = vld [vmem:[%s4] sm:$0x1f]
  %v450 = vlaneseq
  %v451 = vshrl.u32 %v450, 7
  %v452 = vsub.s32 0, %v451
  %v453 = vrot.slane %v448, %v452
  %v454 = vlaneseq
  %v455 = vshrl.u32 %v454, 7
  %v456 = vsub.s32 1, %v455
  %v457 = vrot.slane %v448, %v456
  %v458 = vlaneseq
  %v459 = vshrl.u32 %v458, 7
  %v460 = vsub.s32 2, %v459
  %v461 = vrot.slane %v448, %v460
  %v462 = vlaneseq
  %v463 = vshrl.u32 %v462, 7
  %v464 = vsub.s32 3, %v463
  %v465 = vrot.slane %v448, %v464
  %v466 = vlaneseq
  %v467 = vshrl.u32 %v466, 7
  %v468 = vsub.s32 4, %v467
  %v469 = vrot.slane %v448, %v468
  %v619 = vunpack.c.l.b16 %v304
  %v620 = vunpack.c.h.b16 %v304
  %v621 = vunpack.c.l.b16 %v305
  %v622 = vunpack.c.h.b16 %v305
  %v623 = vunpack.c.l.b16 %v306
  %v624 = vunpack.c.l.b16 %v307
  %v625 = vunpack.c.h.b16 %v307
  %v626 = vunpack.c.l.b16 %v308
  %v627 = vunpack.c.h.b16 %v308
  %v628 = vunpack.c.l.b16 %v309
  %v629 = vunpack.c.l.b16 %v310
  %v630 = vunpack.c.h.b16 %v310
  %v631 = vunpack.c.l.b16 %v311
  %v632 = vunpack.c.h.b16 %v311
  %v633 = vunpack.c.l.b16 %v312
  %v634 = vunpack.c.l.b16 %v313
  %v635 = vunpack.c.h.b16 %v313
  %v636 = vunpack.c.l.b16 %v314
  %v637 = vunpack.c.h.b16 %v314
  %v638 = vunpack.c.l.b16 %v315
  %v639 = vunpack.c.l.b16 %v316
  %v640 = vunpack.c.h.b16 %v316
  %v641 = vunpack.c.l.b16 %v317
  %v642 = vunpack.c.h.b16 %v317
  %v643 = vunpack.c.l.b16 %v318
  %v644 = vunpack.c.l.b16 %v319
  %v645 = vunpack.c.h.b16 %v319
  %v646 = vunpack.c.l.b16 %v320
  %v647 = vunpack.c.h.b16 %v320
  %v648 = vunpack.c.l.b16 %v321
  %v649 = vunpack.c.l.b16 %v322
  %v650 = vunpack.c.h.b16 %v322
  %v651 = vunpack.c.l.b16 %v323
  %v652 = vunpack.c.h.b16 %v323
  %v653 = vunpack.c.l.b16 %v324
  %v654 = vunpack.c.l.b16 %v325
  %v655 = vunpack.c.h.b16 %v325
  %v656 = vunpack.c.l.b16 %v326
  %v657 = vunpack.c.h.b16 %v326
  %v658 = vunpack.c.l.b16 %v327
  %v659 = vunpack.c.l.b16 %v328
  %v660 = vunpack.c.h.b16 %v328
  %v661 = vunpack.c.l.b16 %v329
  %v662 = vunpack.c.h.b16 %v329
  %v663 = vunpack.c.l.b16 %v330
  %v664 = vunpack.c.l.b16 %v331
  %v665 = vunpack.c.h.b16 %v331
  %v666 = vunpack.c.l.b16 %v332
  %v667 = vunpack.c.h.b16 %v332
  %v668 = vunpack.c.l.b16 %v333
  %v669 = vunpack.c.l.b16 %v334
  %v670 = vunpack.c.h.b16 %v334
  %v671 = vunpack.c.l.b16 %v335
  %v672 = vunpack.c.h.b16 %v335
  %v673 = vunpack.c.l.b16 %v336
  %v674 = vunpack.c.l.b16 %v337
  %v675 = vunpack.c.h.b16 %v337
  %v676 = vunpack.c.l.b16 %v338
  %v677 = vunpack.c.h.b16 %v338
  %v678 = vunpack.c.l.b16 %v339
  %v679 = vunpack.c.l.b16 %v340
  %v680 = vunpack.c.h.b16 %v340
  %v681 = vunpack.c.l.b16 %v341
  %v682 = vunpack.c.h.b16 %v341
  %v683 = vunpack.c.l.b16 %v342
  %v684 = vunpack.c.l.b16 %v343
  %v685 = vunpack.c.h.b16 %v343
  %v686 = vunpack.c.l.b16 %v344
  %v687 = vunpack.c.h.b16 %v344
  %v688 = vunpack.c.l.b16 %v345
  %v689 = vunpack.c.l.b16 %v346
  %v690 = vunpack.c.h.b16 %v346
  %v691 = vunpack.c.l.b16 %v347
  %v692 = vunpack.c.h.b16 %v347
  %v693 = vunpack.c.l.b16 %v348
  %v694 = vunpack.c.l.b16 %v349
  %v695 = vunpack.c.h.b16 %v349
  %v696 = vunpack.c.l.b16 %v350
  %v697 = vunpack.c.h.b16 %v350
  %v698 = vunpack.c.l.b16 %v351
  %v699 = vunpack.c.l.b16 %v352
  %v700 = vunpack.c.h.b16 %v352
  %v701 = vunpack.c.l.b16 %v353
  %v702 = vunpack.c.h.b16 %v353
  %v703 = vunpack.c.l.b16 %v354
  %v704 = vunpack.c.l.b16 %v355
  %v705 = vunpack.c.h.b16 %v355
  %v706 = vunpack.c.l.b16 %v356
  %v707 = vunpack.c.h.b16 %v356
  %v708 = vunpack.c.l.b16 %v357
  %v709 = vunpack.c.l.b16 %v358
  %v710 = vunpack.c.h.b16 %v358
  %v711 = vunpack.c.l.b16 %v359
  %v712 = vunpack.c.h.b16 %v359
  %v713 = vunpack.c.l.b16 %v360
  %v714 = vunpack.c.l.b16 %v361
  %v715 = vunpack.c.h.b16 %v361
  %v716 = vunpack.c.l.b16 %v362
  %v717 = vunpack.c.h.b16 %v362
  %v718 = vunpack.c.l.b16 %v363
  %v719 = vunpack.c.l.b16 %v364
  %v720 = vunpack.c.h.b16 %v364
  %v721 = vunpack.c.l.b16 %v365
  %v722 = vunpack.c.h.b16 %v365
  %v723 = vunpack.c.l.b16 %v366
  %v724 = vunpack.c.l.b16 %v367
  %v725 = vunpack.c.h.b16 %v367
  %v726 = vunpack.c.l.b16 %v368
  %v727 = vunpack.c.h.b16 %v368
  %v728 = vunpack.c.l.b16 %v369
  %v729 = vunpack.c.l.b16 %v370
  %v730 = vunpack.c.h.b16 %v370
  %v731 = vunpack.c.l.b16 %v371
  %v732 = vunpack.c.h.b16 %v371
  %v733 = vunpack.c.l.b16 %v372
  %v734 = vunpack.c.l.b16 %v373
  %v735 = vunpack.c.h.b16 %v373
  %v736 = vunpack.c.l.b16 %v374
  %v737 = vunpack.c.h.b16 %v374
  %v738 = vunpack.c.l.b16 %v375
  %v739 = vunpack.c.l.b16 %v376
  %v740 = vunpack.c.h.b16 %v376
  %v741 = vunpack.c.l.b16 %v377
  %v742 = vunpack.c.h.b16 %v377
  %v743 = vunpack.c.l.b16 %v378
  %v744 = vunpack.c.l.b16 %v379
  %v745 = vunpack.c.h.b16 %v379
  %v746 = vunpack.c.l.b16 %v380
  %v747 = vunpack.c.h.b16 %v380
  %v748 = vunpack.c.l.b16 %v381
  %v749 = vunpack.c.l.b16 %v382
  %v750 = vunpack.c.h.b16 %v382
  %v751 = vunpack.c.l.b16 %v383
  %v752 = vunpack.c.h.b16 %v383
  %v753 = vunpack.c.l.b16 %v384
  %v754 = vunpack.c.l.b16 %v385
  %v755 = vunpack.c.h.b16 %v385
  %v756 = vunpack.c.l.b16 %v386
  %v757 = vunpack.c.h.b16 %v386
  %v758 = vunpack.c.l.b16 %v387
  %v759 = vunpack.c.l.b16 %v388
  %v760 = vunpack.c.h.b16 %v388
  %v761 = vunpack.c.l.b16 %v389
  %v762 = vunpack.c.h.b16 %v389
  %v763 = vunpack.c.l.b16 %v390
  %v764 = vunpack.c.l.b16 %v391
  %v765 = vunpack.c.h.b16 %v391
  %v766 = vunpack.c.l.b16 %v392
  %v767 = vunpack.c.h.b16 %v392
  %v768 = vunpack.c.l.b16 %v393
  %v769 = vunpack.c.l.b16 %v394
  %v770 = vunpack.c.h.b16 %v394
  %v771 = vunpack.c.l.b16 %v395
  %v772 = vunpack.c.h.b16 %v395
  %v773 = vunpack.c.l.b16 %v396
  %v774 = vunpack.c.l.b16 %v397
  %v775 = vunpack.c.h.b16 %v397
  %v776 = vunpack.c.l.b16 %v398
  %v777 = vunpack.c.h.b16 %v398
  %v778 = vunpack.c.l.b16 %v399
  %v779 = vunpack.c.l.b16 %v400
  %v780 = vunpack.c.h.b16 %v400
  %v781 = vunpack.c.l.b16 %v401
  %v782 = vunpack.c.h.b16 %v401
  %v783 = vunpack.c.l.b16 %v402
  %v784 = vunpack.c.l.b16 %v403
  %v785 = vunpack.c.h.b16 %v403
  %v786 = vunpack.c.l.b16 %v404
  %v787 = vunpack.c.h.b16 %v404
  %v788 = vunpack.c.l.b16 %v405
  %v789 = vunpack.c.l.b16 %v406
  %v790 = vunpack.c.h.b16 %v406
  %v791 = vunpack.c.l.b16 %v407
  %v792 = vunpack.c.h.b16 %v407
  %v793 = vunpack.c.l.b16 %v408
  %v794 = vunpack.c.l.b16 %v409
  %v795 = vunpack.c.h.b16 %v409
  %v796 = vunpack.c.l.b16 %v410
  %v797 = vunpack.c.h.b16 %v410
  %v798 = vunpack.c.l.b16 %v411
  %v799 = vunpack.c.l.b16 %v412
  %v800 = vunpack.c.h.b16 %v412
  %v801 = vunpack.c.l.b16 %v413
  %v802 = vunpack.c.h.b16 %v413
  %v803 = vunpack.c.l.b16 %v414
  %v804 = vunpack.c.l.b16 %v415
  %v805 = vunpack.c.h.b16 %v415
  %v806 = vunpack.c.l.b16 %v416
  %v807 = vunpack.c.h.b16 %v416
  %v808 = vunpack.c.l.b16 %v417
  %v809 = vunpack.c.l.b16 %v418
  %v810 = vunpack.c.h.b16 %v418
  %v811 = vunpack.c.l.b16 %v419
  %v812 = vunpack.c.h.b16 %v419
  %v813 = vunpack.c.l.b16 %v420
  %v814 = vunpack.c.l.b16 %v421
  %v815 = vunpack.c.h.b16 %v421
  %v816 = vunpack.c.l.b16 %v422
  %v817 = vunpack.c.h.b16 %v422
  %v818 = vunpack.c.l.b16 %v423
  %v819 = vunpack.c.l.b16 %v424
  %v820 = vunpack.c.h.b16 %v424
  %v821 = vunpack.c.l.b16 %v425
  %v822 = vunpack.c.h.b16 %v425
  %v823 = vunpack.c.l.b16 %v426
  %v824 = vunpack.c.l.b16 %v427
  %v825 = vunpack.c.h.b16 %v427
  %v826 = vunpack.c.l.b16 %v428
  %v827 = vunpack.c.h.b16 %v428
  %v828 = vunpack.c.l.b16 %v429
  %v829 = vunpack.c.l.b16 %v430
  %v830 = vunpack.c.h.b16 %v430
  %v831 = vunpack.c.l.b16 %v431
  %v832 = vunpack.c.h.b16 %v431
  %v833 = vunpack.c.l.b16 %v432
  %v834 = vunpack.c.l.b16 %v433
  %v835 = vunpack.c.h.b16 %v433
  %v836 = vunpack.c.l.b16 %v434
  %v837 = vunpack.c.h.b16 %v434
  %v838 = vunpack.c.l.b16 %v435
  %v839 = vunpack.c.l.b16 %v436
  %v840 = vunpack.c.h.b16 %v436
  %v841 = vunpack.c.l.b16 %v437
  %v842 = vunpack.c.h.b16 %v437
  %v843 = vunpack.c.l.b16 %v438
  %v844 = vunpack.c.l.b16 %v439
  %v845 = vunpack.c.h.b16 %v439
  %v846 = vunpack.c.l.b16 %v440
  %v847 = vunpack.c.h.b16 %v440
  %v848 = vunpack.c.l.b16 %v441
  %v849 = vunpack.c.l.b16 %v442
  %v850 = vunpack.c.h.b16 %v442
  %v851 = vunpack.c.l.b16 %v443
  %v852 = vunpack.c.h.b16 %v443
  %v853 = vunpack.c.l.b16 %v444
  %v854 = vunpack.c.l.b16 %v445
  %v855 = vunpack.c.h.b16 %v445
  %v856 = vunpack.c.l.b16 %v446
  %v857 = vunpack.c.h.b16 %v446
  %v858 = vunpack.c.l.b16 %v447
  %v859 = vpack.c.b16 %v624, %v619
  %v860 = vpack.c.b16 %v625, %v620
  %v861 = vpack.c.b16 %v626, %v621
  %v862 = vpack.c.b16 %v627, %v622
  %v863 = vpack.c.b16 %v628, %v623
  %v864 = vpack.c.b16 %v634, %v629
  %v865 = vpack.c.b16 %v635, %v630
  %v866 = vpack.c.b16 %v636, %v631
  %v867 = vpack.c.b16 %v637, %v632
  %v868 = vpack.c.b16 %v638, %v633
  %v869 = vpack.c.b16 %v644, %v639
  %v870 = vpack.c.b16 %v645, %v640
  %v871 = vpack.c.b16 %v646, %v641
  %v872 = vpack.c.b16 %v647, %v642
  %v873 = vpack.c.b16 %v648, %v643
  %v874 = vpack.c.b16 %v654, %v649
  %v875 = vpack.c.b16 %v655, %v650
  %v876 = vpack.c.b16 %v656, %v651
  %v877 = vpack.c.b16 %v657, %v652
  %v878 = vpack.c.b16 %v658, %v653
  %v879 = vpack.c.b16 %v664, %v659
  %v880 = vpack.c.b16 %v665, %v660
  %v881 = vpack.c.b16 %v666, %v661
  %v882 = vpack.c.b16 %v667, %v662
  %v883 = vpack.c.b16 %v668, %v663
  %v884 = vpack.c.b16 %v674, %v669
  %v885 = vpack.c.b16 %v675, %v670
  %v886 = vpack.c.b16 %v676, %v671
  %v887 = vpack.c.b16 %v677, %v672
  %v888 = vpack.c.b16 %v678, %v673
  %v889 = vpack.c.b16 %v684, %v679
  %v890 = vpack.c.b16 %v685, %v680
  %v891 = vpack.c.b16 %v686, %v681
  %v892 = vpack.c.b16 %v687, %v682
  %v893 = vpack.c.b16 %v688, %v683
  %v894 = vpack.c.b16 %v694, %v689
  %v895 = vpack.c.b16 %v695, %v690
  %v896 = vpack.c.b16 %v696, %v691
  %v897 = vpack.c.b16 %v697, %v692
  %v898 = vpack.c.b16 %v698, %v693
  %v899 = vpack.c.b16 %v704, %v699
  %v900 = vpack.c.b16 %v705, %v700
  %v901 = vpack.c.b16 %v706, %v701
  %v902 = vpack.c.b16 %v707, %v702
  %v903 = vpack.c.b16 %v708, %v703
  %v904 = vpack.c.b16 %v714, %v709
  %v905 = vpack.c.b16 %v715, %v710
  %v906 = vpack.c.b16 %v716, %v711
  %v907 = vpack.c.b16 %v717, %v712
  %v908 = vpack.c.b16 %v718, %v713
  %v909 = vpack.c.b16 %v724, %v719
  %v910 = vpack.c.b16 %v725, %v720
  %v911 = vpack.c.b16 %v726, %v721
  %v912 = vpack.c.b16 %v727, %v722
  %v913 = vpack.c.b16 %v728, %v723
  %v914 = vpack.c.b16 %v734, %v729
  %v915 = vpack.c.b16 %v735, %v730
  %v916 = vpack.c.b16 %v736, %v731
  %v917 = vpack.c.b16 %v737, %v732
  %v918 = vpack.c.b16 %v738, %v733
  %v919 = vpack.c.b16 %v744, %v739
  %v920 = vpack.c.b16 %v745, %v740
  %v921 = vpack.c.b16 %v746, %v741
  %v922 = vpack.c.b16 %v747, %v742
  %v923 = vpack.c.b16 %v748, %v743
  %v924 = vpack.c.b16 %v754, %v749
  %v925 = vpack.c.b16 %v755, %v750
  %v926 = vpack.c.b16 %v756, %v751
  %v927 = vpack.c.b16 %v757, %v752
  %v928 = vpack.c.b16 %v758, %v753
  %v929 = vpack.c.b16 %v764, %v759
  %v930 = vpack.c.b16 %v765, %v760
  %v931 = vpack.c.b16 %v766, %v761
  %v932 = vpack.c.b16 %v767, %v762
  %v933 = vpack.c.b16 %v768, %v763
  %v934 = vpack.c.b16 %v774, %v769
  %v935 = vpack.c.b16 %v775, %v770
  %v936 = vpack.c.b16 %v776, %v771
  %v937 = vpack.c.b16 %v777, %v772
  %v938 = vpack.c.b16 %v778, %v773
  %v939 = vpack.c.b16 %v784, %v779
  %v940 = vpack.c.b16 %v785, %v780
  %v941 = vpack.c.b16 %v786, %v781
  %v942 = vpack.c.b16 %v787, %v782
  %v943 = vpack.c.b16 %v788, %v783
  %v944 = vpack.c.b16 %v794, %v789
  %v945 = vpack.c.b16 %v795, %v790
  %v946 = vpack.c.b16 %v796, %v791
  %v947 = vpack.c.b16 %v797, %v792
  %v948 = vpack.c.b16 %v798, %v793
  %v949 = vpack.c.b16 %v804, %v799
  %v950 = vpack.c.b16 %v805, %v800
  %v951 = vpack.c.b16 %v806, %v801
  %v952 = vpack.c.b16 %v807, %v802
  %v953 = vpack.c.b16 %v808, %v803
  %v954 = vpack.c.b16 %v814, %v809
  %v955 = vpack.c.b16 %v815, %v810
  %v956 = vpack.c.b16 %v816, %v811
  %v957 = vpack.c.b16 %v817, %v812
  %v958 = vpack.c.b16 %v818, %v813
  %v959 = vpack.c.b16 %v824, %v819
  %v960 = vpack.c.b16 %v825, %v820
  %v961 = vpack.c.b16 %v826, %v821
  %v962 = vpack.c.b16 %v827, %v822
  %v963 = vpack.c.b16 %v828, %v823
  %v964 = vpack.c.b16 %v834, %v829
  %v965 = vpack.c.b16 %v835, %v830
  %v966 = vpack.c.b16 %v836, %v831
  %v967 = vpack.c.b16 %v837, %v832
  %v968 = vpack.c.b16 %v838, %v833
  %v969 = vpack.c.b16 %v844, %v839
  %v970 = vpack.c.b16 %v845, %v840
  %v971 = vpack.c.b16 %v846, %v841
  %v972 = vpack.c.b16 %v847, %v842
  %v973 = vpack.c.b16 %v848, %v843
  %v974 = vpack.c.b16 %v854, %v849
  %v975 = vpack.c.b16 %v855, %v850
  %v976 = vpack.c.b16 %v856, %v851
  %v977 = vpack.c.b16 %v857, %v852
  %v978 = vpack.c.b16 %v858, %v853
  %1099 = vmatprep.subr.bf16.mxu0 %v860
  %1100 = vmatpush1.bf16.msra.mxu0 %v859
  %1101 = vmatprep.subr.bf16.mxu0 %v865
  %1102 = vmatpush1.bf16.msra.mxu0 %v864
  %1103 = vmatprep.subr.bf16.mxu0 %v870
  %1104 = vmatpush1.bf16.msra.mxu0 %v869
  %1105 = vmatprep.subr.bf16.mxu0 %v875
  %1106 = vmatpush1.bf16.msra.mxu0 %v874
  %1107 = vmatprep.subr.bf16.mxu0 %v880
  %1108 = vmatpush1.bf16.msra.mxu0 %v879
  %1109 = vmatprep.subr.bf16.mxu0 %v885
  %1110 = vmatpush1.bf16.msra.mxu0 %v884
  %1111 = vmatprep.subr.bf16.mxu0 %v890
  %1112 = vmatpush1.bf16.msra.mxu0 %v889
  %1113 = vmatprep.subr.bf16.mxu0 %v895
  %1114 = vmatpush1.bf16.msra.mxu0 %v894
  %1115 = vmatprep.subr.bf16.mxu0 %v900
  %1116 = vmatpush1.bf16.msra.mxu0 %v899
  %1117 = vmatprep.subr.bf16.mxu0 %v905
  %1118 = vmatpush1.bf16.msra.mxu0 %v904
  %1119 = vmatprep.subr.bf16.mxu0 %v910
  %1120 = vmatpush1.bf16.msra.mxu0 %v909
  %1121 = vmatprep.subr.bf16.mxu0 %v915
  %1122 = vmatpush1.bf16.msra.mxu0 %v914
  %1123 = vmatprep.subr.bf16.mxu0 %v920
  %1124 = vmatpush1.bf16.msra.mxu0 %v919
  %1125 = vmatprep.subr.bf16.mxu0 %v925
  %1126 = vmatpush1.bf16.msra.mxu0 %v924
  %1127 = vmatprep.subr.bf16.mxu0 %v930
  %1128 = vmatpush1.bf16.msra.mxu0 %v929
  %1129 = vmatprep.subr.bf16.mxu0 %v935
  %1130 = vmatpush1.bf16.msra.mxu0 %v934
  %1131 = vmatprep.mubr.bf16.mxu0 %v302
  %1132 = vmatmul.mubr.bf16.gmra.mrb[0].mxu0 %v301
  %v1133 = vpop.f32.mrb[0].mxu0
  %v1134 = vadd.f32 %v453, %v1133
  %v1135 = vpop.f32.mrb[0].mxu0
  %v1136 = vadd.f32 %v457, %v1135
  %v1137 = vpop.f32.mrb[0].mxu0
  %v1138 = vpop.f32.mrb[0].mxu0
  %1139 = vdwg.mxu0
  %1140 = vmatprep.subr.bf16.mxu0 %v940
  %1141 = vmatpush1.bf16.msra.mxu0 %v939
  %1142 = vmatprep.subr.bf16.mxu0 %v945
  %1143 = vmatpush1.bf16.msra.mxu0 %v944
  %1144 = vmatprep.subr.bf16.mxu0 %v950
  %1145 = vmatpush1.bf16.msra.mxu0 %v949
  %1146 = vmatprep.subr.bf16.mxu0 %v955
  %1147 = vmatpush1.bf16.msra.mxu0 %v954
  %1148 = vmatprep.subr.bf16.mxu0 %v960
  %1149 = vmatpush1.bf16.msra.mxu0 %v959
  %1150 = vmatprep.subr.bf16.mxu0 %v965
  %1151 = vmatpush1.bf16.msra.mxu0 %v964
  %1152 = vmatprep.subr.bf16.mxu0 %v970
  %1153 = vmatpush1.bf16.msra.mxu0 %v969
  %1154 = vmatprep.subr.bf16.mxu0 %v975
  %1155 = vmatpush1.bf16.msra.mxu0 %v974
  %1156 = vmatprep.subr.bf16.mxu0 0
  %1157 = vmatpush1.bf16.msra.mxu0 0
  %1158 = vmatprep.subr.bf16.mxu0 0
  %1159 = vmatpush1.bf16.msra.mxu0 0
  %1160 = vmatprep.subr.bf16.mxu0 0
  %1161 = vmatpush1.bf16.msra.mxu0 0
  %1162 = vmatprep.subr.bf16.mxu0 0
  %1163 = vmatpush1.bf16.msra.mxu0 0
  %1164 = vmatprep.subr.bf16.mxu0 0
  %1165 = vmatpush1.bf16.msra.mxu0 0
  %1166 = vmatprep.subr.bf16.mxu0 0
  %1167 = vmatpush1.bf16.msra.mxu0 0
  %1168 = vmatprep.subr.bf16.mxu0 0
  %1169 = vmatpush1.bf16.msra.mxu0 0
  %1170 = vmatprep.subr.bf16.mxu0 0
  %1171 = vmatpush1.bf16.msra.mxu0 0
  %1172 = vmatprep.mubr.bf16.mxu0 0
  %1173 = vmatmul.mubr.bf16.gmra.mrb[0].mxu0 %v303
  %v1174 = vpop.f32.mrb[0].mxu0
  %v1175 = vadd.f32 %v1134, %v1174
  %v1176 = vpop.f32.mrb[0].mxu0
  %v1177 = vadd.f32 %v1136, %v1176
  %v1178 = vpop.f32.mrb[0].mxu0
  %v1179 = vpop.f32.mrb[0].mxu0
  %1180 = vdwg.mxu0
  %1181 = vmatprep.subr.bf16.mxu0 %v862
  %1182 = vmatpush1.bf16.msra.mxu0 %v861
  %1183 = vmatprep.subr.bf16.mxu0 %v867
  %1184 = vmatpush1.bf16.msra.mxu0 %v866
  %1185 = vmatprep.subr.bf16.mxu0 %v872
  %1186 = vmatpush1.bf16.msra.mxu0 %v871
  %1187 = vmatprep.subr.bf16.mxu0 %v877
  %1188 = vmatpush1.bf16.msra.mxu0 %v876
  %1189 = vmatprep.subr.bf16.mxu0 %v882
  %1190 = vmatpush1.bf16.msra.mxu0 %v881
  %1191 = vmatprep.subr.bf16.mxu0 %v887
  %1192 = vmatpush1.bf16.msra.mxu0 %v886
  %1193 = vmatprep.subr.bf16.mxu0 %v892
  %1194 = vmatpush1.bf16.msra.mxu0 %v891
  %1195 = vmatprep.subr.bf16.mxu0 %v897
  %1196 = vmatpush1.bf16.msra.mxu0 %v896
  %1197 = vmatprep.subr.bf16.mxu0 %v902
  %1198 = vmatpush1.bf16.msra.mxu0 %v901
  %1199 = vmatprep.subr.bf16.mxu0 %v907
  %1200 = vmatpush1.bf16.msra.mxu0 %v906
  %1201 = vmatprep.subr.bf16.mxu0 %v912
  %1202 = vmatpush1.bf16.msra.mxu0 %v911
  %1203 = vmatprep.subr.bf16.mxu0 %v917
  %1204 = vmatpush1.bf16.msra.mxu0 %v916
  %1205 = vmatprep.subr.bf16.mxu0 %v922
  %1206 = vmatpush1.bf16.msra.mxu0 %v921
  %1207 = vmatprep.subr.bf16.mxu0 %v927
  %1208 = vmatpush1.bf16.msra.mxu0 %v926
  %1209 = vmatprep.subr.bf16.mxu0 %v932
  %1210 = vmatpush1.bf16.msra.mxu0 %v931
  %1211 = vmatprep.subr.bf16.mxu0 %v937
  %1212 = vmatpush1.bf16.msra.mxu0 %v936
  %1213 = vmatprep.mubr.bf16.mxu0 %v302
  %1214 = vmatmul.mubr.bf16.gmra.mrb[0].mxu0 %v301
  %v1215 = vpop.f32.mrb[0].mxu0
  %v1216 = vadd.f32 %v461, %v1215
  %v1217 = vpop.f32.mrb[0].mxu0
  %v1218 = vadd.f32 %v465, %v1217
  %v1219 = vpop.f32.mrb[0].mxu0
  %v1220 = vpop.f32.mrb[0].mxu0
  %1221 = vdwg.mxu0
  %1222 = vmatprep.subr.bf16.mxu0 %v942
  %1223 = vmatpush1.bf16.msra.mxu0 %v941
  %1224 = vmatprep.subr.bf16.mxu0 %v947
  %1225 = vmatpush1.bf16.msra.mxu0 %v946
  %1226 = vmatprep.subr.bf16.mxu0 %v952
  %1227 = vmatpush1.bf16.msra.mxu0 %v951
  %1228 = vmatprep.subr.bf16.mxu0 %v957
  %1229 = vmatpush1.bf16.msra.mxu0 %v956
  %1230 = vmatprep.subr.bf16.mxu0 %v962
  %1231 = vmatpush1.bf16.msra.mxu0 %v961
  %1232 = vmatprep.subr.bf16.mxu0 %v967
  %1233 = vmatpush1.bf16.msra.mxu0 %v966
  %1234 = vmatprep.subr.bf16.mxu0 %v972
  %1235 = vmatpush1.bf16.msra.mxu0 %v971
  %1236 = vmatprep.subr.bf16.mxu0 %v977
  %1237 = vmatpush1.bf16.msra.mxu0 %v976
  %1238 = vmatprep.subr.bf16.mxu0 0
  %1239 = vmatpush1.bf16.msra.mxu0 0
  %1240 = vmatprep.subr.bf16.mxu0 0
  %1241 = vmatpush1.bf16.msra.mxu0 0
  %1242 = vmatprep.subr.bf16.mxu0 0
  %1243 = vmatpush1.bf16.msra.mxu0 0
  %1244 = vmatprep.subr.bf16.mxu0 0
  %1245 = vmatpush1.bf16.msra.mxu0 0
  %1246 = vmatprep.subr.bf16.mxu0 0
  %1247 = vmatpush1.bf16.msra.mxu0 0
  %1248 = vmatprep.subr.bf16.mxu0 0
  %1249 = vmatpush1.bf16.msra.mxu0 0
  %1250 = vmatprep.subr.bf16.mxu0 0
  %1251 = vmatpush1.bf16.msra.mxu0 0
  %1252 = vmatprep.subr.bf16.mxu0 0
  %1253 = vmatpush1.bf16.msra.mxu0 0
  %1254 = vmatprep.mubr.bf16.mxu0 0
  %1255 = vmatmul.mubr.bf16.gmra.mrb[0].mxu0 %v303
  %v1256 = vpop.f32.mrb[0].mxu0
  %v1257 = vadd.f32 %v1216, %v1256
  %v1258 = vpop.f32.mrb[0].mxu0
  %v1259 = vadd.f32 %v1218, %v1258
  %v1260 = vpop.f32.mrb[0].mxu0
  %v1261 = vpop.f32.mrb[0].mxu0
  %1262 = vdwg.mxu0
  %1263 = vmatprep.subr.bf16.mxu0 0
  %1264 = vmatpush1.bf16.msra.mxu0 %v863
  %1265 = vmatprep.subr.bf16.mxu0 0
  %1266 = vmatpush1.bf16.msra.mxu0 %v868
  %1267 = vmatprep.subr.bf16.mxu0 0
  %1268 = vmatpush1.bf16.msra.mxu0 %v873
  %1269 = vmatprep.subr.bf16.mxu0 0
  %1270 = vmatpush1.bf16.msra.mxu0 %v878
  %1271 = vmatprep.subr.bf16.mxu0 0
  %1272 = vmatpush1.bf16.msra.mxu0 %v883
  %1273 = vmatprep.subr.bf16.mxu0 0
  %1274 = vmatpush1.bf16.msra.mxu0 %v888
  %1275 = vmatprep.subr.bf16.mxu0 0
  %1276 = vmatpush1.bf16.msra.mxu0 %v893
  %1277 = vmatprep.subr.bf16.mxu0 0
  %1278 = vmatpush1.bf16.msra.mxu0 %v898
  %1279 = vmatprep.subr.bf16.mxu0 0
  %1280 = vmatpush1.bf16.msra.mxu0 %v903
  %1281 = vmatprep.subr.bf16.mxu0 0
  %1282 = vmatpush1.bf16.msra.mxu0 %v908
  %1283 = vmatprep.subr.bf16.mxu0 0
  %1284 = vmatpush1.bf16.msra.mxu0 %v913
  %1285 = vmatprep.subr.bf16.mxu0 0
  %1286 = vmatpush1.bf16.msra.mxu0 %v918
  %1287 = vmatprep.subr.bf16.mxu0 0
  %1288 = vmatpush1.bf16.msra.mxu0 %v923
  %1289 = vmatprep.subr.bf16.mxu0 0
  %1290 = vmatpush1.bf16.msra.mxu0 %v928
  %1291 = vmatprep.subr.bf16.mxu0 0
  %1292 = vmatpush1.bf16.msra.mxu0 %v933
  %1293 = vmatprep.subr.bf16.mxu0 0
  %1294 = vmatpush1.bf16.msra.mxu0 %v938
  %1295 = vmatprep.mubr.bf16.mxu0 %v302
  %1296 = vmatmul.mubr.bf16.gmra.mrb[0].mxu0 %v301
  %v1297 = vpop.f32.mrb[0].mxu0
  %v1298 = vadd.f32 %v469, %v1297
  %v1299 = vpop.f32.mrb[0].mxu0
  %v1300 = vpop.f32.mrb[0].mxu0
  %v1301 = vpop.f32.mrb[0].mxu0
  %1302 = vdwg.mxu0
  %1303 = vmatprep.subr.bf16.mxu0 0
  %1304 = vmatpush1.bf16.msra.mxu0 %v943
  %1305 = vmatprep.subr.bf16.mxu0 0
  %1306 = vmatpush1.bf16.msra.mxu0 %v948
  %1307 = vmatprep.subr.bf16.mxu0 0
  %1308 = vmatpush1.bf16.msra.mxu0 %v953
  %1309 = vmatprep.subr.bf16.mxu0 0
  %1310 = vmatpush1.bf16.msra.mxu0 %v958
  %1311 = vmatprep.subr.bf16.mxu0 0
  %1312 = vmatpush1.bf16.msra.mxu0 %v963
  %1313 = vmatprep.subr.bf16.mxu0 0
  %1314 = vmatpush1.bf16.msra.mxu0 %v968
  %1315 = vmatprep.subr.bf16.mxu0 0
  %1316 = vmatpush1.bf16.msra.mxu0 %v973
  %1317 = vmatprep.subr.bf16.mxu0 0
  %1318 = vmatpush1.bf16.msra.mxu0 %v978
  %1319 = vmatprep.subr.bf16.mxu0 0
  %1320 = vmatpush1.bf16.msra.mxu0 0
  %1321 = vmatprep.subr.bf16.mxu0 0
  %1322 = vmatpush1.bf16.msra.mxu0 0
  %1323 = vmatprep.subr.bf16.mxu0 0
  %1324 = vmatpush1.bf16.msra.mxu0 0
  %1325 = vmatprep.subr.bf16.mxu0 0
  %1326 = vmatpush1.bf16.msra.mxu0 0
  %1327 = vmatprep.subr.bf16.mxu0 0
  %1328 = vmatpush1.bf16.msra.mxu0 0
  %1329 = vmatprep.subr.bf16.mxu0 0
  %1330 = vmatpush1.bf16.msra.mxu0 0
  %1331 = vmatprep.subr.bf16.mxu0 0
  %1332 = vmatpush1.bf16.msra.mxu0 0
  %1333 = vmatprep.subr.bf16.mxu0 0
  %1334 = vmatpush1.bf16.msra.mxu0 0
  %1335 = vmatprep.mubr.bf16.mxu0 0
  %1336 = vmatmul.mubr.bf16.gmra.mrb[0].mxu0 %v303
  %v1337 = vpop.f32.mrb[0].mxu0
  %v1338 = vadd.f32 %v1298, %v1337
  %v1339 = vpop.f32.mrb[0].mxu0
  %v1340 = vpop.f32.mrb[0].mxu0
  %v1341 = vpop.f32.mrb[0].mxu0
  %1342 = vdwg.mxu0
  %v1343 = vmax.f32 %v1175, 0.0
  %v1344 = vmax.f32 %v1177, 0.0
  %v1345 = vmax.f32 %v1257, 0.0
  %v1346 = vmax.f32 %v1259, 0.0
  %v1347 = vmax.f32 %v1338, 0.0
  %v1348 = vpack.c.bf16 %v1343, %v1343
  %v1349 = vpack.c.bf16 %v1344, %v1344
  %v1350 = vpack.c.bf16 %v1345, %v1345
  %v1351 = vpack.c.bf16 %v1346, %v1346
  %v1352 = vpack.c.bf16 %v1347, %v1347
  %v1353 = vld [vmem:[%s5] sm:$0xff]
  %v1354 = vld [vmem:[%s5 + $0x8] sm:$0xff]
  %v1355 = vld [vmem:[%s5 + $0x10] sm:$0xff]
  %v1356 = vld [vmem:[%s5 + $0x18] sm:$0xff]
  %v1357 = vld [vmem:[%s5 + $0x20] sm:$0xff]
  %v1358 = vld [vmem:[%s5 + $0x28] sm:$0xff]
  %v1359 = vld [vmem:[%s5 + $0x30] sm:$0xff]
  %v1360 = vld [vmem:[%s5 + $0x38] sm:$0xff]
  %v1361 = vld [vmem:[%s5 + $0x40] sm:$0xff]
  %v1362 = vld [vmem:[%s5 + $0x48] sm:$0xff]
  %v1363 = vld [vmem:[%s5 + $0x50] sm:$0xff]
  %v1364 = vld [vmem:[%s5 + $0x58] sm:$0xff]
  %v1365 = vld [vmem:[%s5 + $0x60] sm:$0xff]
  %v1366 = vld [vmem:[%s5 + $0x68] sm:$0xff]
  %v1367 = vld [vmem:[%s5 + $0x70] sm:$0xff]
  %v1368 = vld [vmem:[%s5 + $0x78] sm:$0xff]
  %v1369 = vld [vmem:[%s5 + $0x80] sm:$0xff]
  %v1370 = vld [vmem:[%s5 + $0x88] sm:$0xff]
  %v1371 = vld [vmem:[%s5 + $0x90] sm:$0xff]
  %v1372 = vld [vmem:[%s5 + $0x98] sm:$0xff]
  %v1373 = vld [vmem:[%s5 + $0xa0] sm:$0xff]
  %v1374 = vld [vmem:[%s5 + $0xa8] sm:$0xff]
  %v1375 = vld [vmem:[%s5 + $0xb0] sm:$0xff]
  %v1376 = vld [vmem:[%s5 + $0xb8] sm:$0xff]
  %v1377 = vld [vmem:[%s5 + $0xc0] sm:$0xff]
  %v1378 = vld [vmem:[%s5 + $0xc8] sm:$0xff]
  %v1379 = vld [vmem:[%s5 + $0xd0] sm:$0xff]
  %v1380 = vld [vmem:[%s5 + $0xd8] sm:$0xff]
  %v1381 = vld [vmem:[%s5 + $0xe0] sm:$0xff]
  %v1382 = vld [vmem:[%s5 + $0xe8] sm:$0xff]
  %v1383 = vld [vmem:[%s5 + $0xf0] sm:$0xff]
  %v1384 = vld [vmem:[%s5 + $0xf8] sm:$0xff]
  %v1385 = vld [vmem:[%s5 + $0x100] sm:$0xff]
  %v1386 = vld [vmem:[%s5 + $0x108] sm:$0xff]
  %v1387 = vld [vmem:[%s5 + $0x110] sm:$0xff]
  %v1388 = vld [vmem:[%s5 + $0x118] sm:$0xff]
  %v1389 = vld [vmem:[%s5 + $0x120] sm:$0xff]
  %v1390 = vld [vmem:[%s5 + $0x128] sm:$0xff]
  %v1391 = vld [vmem:[%s5 + $0x130] sm:$0xff]
  %v1392 = vld [vmem:[%s5 + $0x138] sm:$0xff]
  %v1393 = vld [vmem:[%s5 + $0x140] sm:$0xff]
  %v1394 = vld [vmem:[%s5 + $0x148] sm:$0xff]
  %v1395 = vld [vmem:[%s5 + $0x150] sm:$0xff]
  %v1396 = vld [vmem:[%s5 + $0x158] sm:$0xff]
  %v1397 = vld [vmem:[%s5 + $0x160] sm:$0xff]
  %v1398 = vld [vmem:[%s5 + $0x168] sm:$0xff]
  %v1399 = vld [vmem:[%s5 + $0x170] sm:$0xff]
  %v1400 = vld [vmem:[%s5 + $0x178] sm:$0xff]
  %v1401 = vld [vmem:[%s5 + $0x180] sm:$0xff]
  %v1402 = vld [vmem:[%s5 + $0x188] sm:$0xff]
  %v1403 = vld [vmem:[%s5 + $0x190] sm:$0xff]
  %v1404 = vld [vmem:[%s5 + $0x198] sm:$0xff]
  %v1405 = vld [vmem:[%s5 + $0x1a0] sm:$0xff]
  %v1406 = vld [vmem:[%s5 + $0x1a8] sm:$0xff]
  %v1407 = vld [vmem:[%s5 + $0x1b0] sm:$0xff]
  %v1408 = vld [vmem:[%s5 + $0x1b8] sm:$0xff]
  %v1409 = vld [vmem:[%s5 + $0x1c0] sm:$0xff]
  %v1410 = vld [vmem:[%s5 + $0x1c8] sm:$0xff]
  %v1411 = vld [vmem:[%s5 + $0x1d0] sm:$0xff]
  %v1412 = vld [vmem:[%s5 + $0x1d8] sm:$0xff]
  %v1413 = vld [vmem:[%s5 + $0x1e0] sm:$0xff]
  %v1414 = vld [vmem:[%s5 + $0x1e8] sm:$0xff]
  %v1415 = vld [vmem:[%s5 + $0x1f0] sm:$0xff]
  %v1416 = vld [vmem:[%s5 + $0x1f8] sm:$0xff]
  %v1417 = vld [vmem:[%s5 + $0x200] sm:$0xff]
  %v1418 = vld [vmem:[%s5 + $0x208] sm:$0xff]
  %v1419 = vld [vmem:[%s5 + $0x210] sm:$0xff]
  %v1420 = vld [vmem:[%s5 + $0x218] sm:$0xff]
  %v1421 = vld [vmem:[%s5 + $0x220] sm:$0xff]
  %v1422 = vld [vmem:[%s5 + $0x228] sm:$0xff]
  %v1423 = vld [vmem:[%s5 + $0x230] sm:$0xff]
  %v1424 = vld [vmem:[%s5 + $0x238] sm:$0xff]
  %v1425 = vld [vmem:[%s5 + $0x240] sm:$0xff]
  %v1426 = vld [vmem:[%s5 + $0x248] sm:$0xff]
  %v1427 = vld [vmem:[%s5 + $0x250] sm:$0xff]
  %v1428 = vld [vmem:[%s5 + $0x258] sm:$0xff]
  %v1429 = vld [vmem:[%s5 + $0x260] sm:$0xff]
  %v1430 = vld [vmem:[%s5 + $0x268] sm:$0xff]
  %v1431 = vld [vmem:[%s5 + $0x270] sm:$0xff]
  %v1432 = vld [vmem:[%s5 + $0x278] sm:$0xff]
  %v1433 = vld [vmem:[%s5 + $0x280] sm:$0xff]
  %v1434 = vld [vmem:[%s5 + $0x288] sm:$0xff]
  %v1435 = vld [vmem:[%s5 + $0x290] sm:$0xff]
  %v1436 = vld [vmem:[%s5 + $0x298] sm:$0xff]
  %v1437 = vld [vmem:[%s5 + $0x2a0] sm:$0xff]
  %v1438 = vld [vmem:[%s5 + $0x2a8] sm:$0xff]
  %v1439 = vld [vmem:[%s5 + $0x2b0] sm:$0xff]
  %v1440 = vld [vmem:[%s5 + $0x2b8] sm:$0xff]
  %v1441 = vld [vmem:[%s5 + $0x2c0] sm:$0xff]
  %v1442 = vld [vmem:[%s5 + $0x2c8] sm:$0xff]
  %v1443 = vld [vmem:[%s5 + $0x2d0] sm:$0xff]
  %v1444 = vld [vmem:[%s5 + $0x2d8] sm:$0xff]
  %v1445 = vld [vmem:[%s5 + $0x2e0] sm:$0xff]
  %v1446 = vld [vmem:[%s5 + $0x2e8] sm:$0xff]
  %v1447 = vld [vmem:[%s5 + $0x2f0] sm:$0xff]
  %v1448 = vld [vmem:[%s5 + $0x2f8] sm:$0xff]
  %v1449 = vld [vmem:[%s5 + $0x300] sm:$0xff]
  %v1450 = vld [vmem:[%s5 + $0x308] sm:$0xff]
  %v1451 = vld [vmem:[%s5 + $0x310] sm:$0xff]
  %v1452 = vld [vmem:[%s5 + $0x318] sm:$0xff]
  %v1453 = vld [vmem:[%s5 + $0x320] sm:$0xff]
  %v1454 = vld [vmem:[%s5 + $0x328] sm:$0xff]
  %v1455 = vld [vmem:[%s5 + $0x330] sm:$0xff]
  %v1456 = vld [vmem:[%s5 + $0x338] sm:$0xff]
  %v1457 = vld [vmem:[%s5 + $0x340] sm:$0xff]
  %v1458 = vld [vmem:[%s5 + $0x348] sm:$0xff]
  %v1459 = vld [vmem:[%s5 + $0x350] sm:$0xff]
  %v1460 = vld [vmem:[%s5 + $0x358] sm:$0xff]
  %v1461 = vld [vmem:[%s5 + $0x360] sm:$0xff]
  %v1462 = vld [vmem:[%s5 + $0x368] sm:$0xff]
  %v1463 = vld [vmem:[%s5 + $0x370] sm:$0xff]
  %v1464 = vld [vmem:[%s5 + $0x378] sm:$0xff]
  %v1465 = vld [vmem:[%s5 + $0x380] sm:$0xff]
  %v1466 = vld [vmem:[%s5 + $0x388] sm:$0xff]
  %v1467 = vld [vmem:[%s5 + $0x390] sm:$0xff]
  %v1468 = vld [vmem:[%s5 + $0x398] sm:$0xff]
  %v1469 = vld [vmem:[%s5 + $0x3a0] sm:$0xff]
  %v1470 = vld [vmem:[%s5 + $0x3a8] sm:$0xff]
  %v1471 = vld [vmem:[%s5 + $0x3b0] sm:$0xff]
  %v1472 = vld [vmem:[%s5 + $0x3b8] sm:$0xff]
  %v1473 = vld [vmem:[%s5 + $0x3c0] sm:$0xff]
  %v1474 = vld [vmem:[%s5 + $0x3c8] sm:$0xff]
  %v1475 = vld [vmem:[%s5 + $0x3d0] sm:$0xff]
  %v1476 = vld [vmem:[%s5 + $0x3d8] sm:$0xff]
  %v1477 = vld [vmem:[%s5 + $0x3e0] sm:$0xff]
  %v1478 = vld [vmem:[%s5 + $0x3e8] sm:$0xff]
  %v1479 = vld [vmem:[%s5 + $0x3f0] sm:$0xff]
  %v1480 = vld [vmem:[%s5 + $0x3f8] sm:$0xff]
  %v1481 = vld [vmem:[%s5 + $0x400] sm:$0xff]
  %v1482 = vld [vmem:[%s5 + $0x408] sm:$0xff]
  %v1483 = vld [vmem:[%s5 + $0x410] sm:$0xff]
  %v1484 = vld [vmem:[%s5 + $0x418] sm:$0xff]
  %v1485 = vld [vmem:[%s5 + $0x420] sm:$0xff]
  %v1486 = vld [vmem:[%s5 + $0x428] sm:$0xff]
  %v1487 = vld [vmem:[%s5 + $0x430] sm:$0xff]
  %v1488 = vld [vmem:[%s5 + $0x438] sm:$0xff]
  %v1489 = vld [vmem:[%s5 + $0x440] sm:$0xff]
  %v1490 = vld [vmem:[%s5 + $0x448] sm:$0xff]
  %v1491 = vld [vmem:[%s5 + $0x450] sm:$0xff]
  %v1492 = vld [vmem:[%s5 + $0x458] sm:$0xff]
  %v1493 = vld [vmem:[%s5 + $0x460] sm:$0xff]
  %v1494 = vld [vmem:[%s5 + $0x468] sm:$0xff]
  %v1495 = vld [vmem:[%s5 + $0x470] sm:$0xff]
  %v1496 = vld [vmem:[%s5 + $0x478] sm:$0xff]
  %v1497 = vld [vmem:[%s6] sm:$0xf]
  %v1499 = vlaneseq
  %v1500 = vshrl.u32 %v1499, 7
  %v1501 = vsub.s32 0, %v1500
  %v1502 = vrot.slane %v1497, %v1501
  %v1503 = vlaneseq
  %v1504 = vshrl.u32 %v1503, 7
  %v1505 = vsub.s32 1, %v1504
  %v1506 = vrot.slane %v1497, %v1505
  %v1507 = vlaneseq
  %v1508 = vshrl.u32 %v1507, 7
  %v1509 = vsub.s32 2, %v1508
  %v1510 = vrot.slane %v1497, %v1509
  %v1511 = vlaneseq
  %v1512 = vshrl.u32 %v1511, 7
  %v1513 = vsub.s32 3, %v1512
  %v1514 = vrot.slane %v1497, %v1513
  %v1663 = vunpack.c.l.b16 %v1353
  %v1664 = vunpack.c.h.b16 %v1353
  %v1665 = vunpack.c.l.b16 %v1354
  %v1666 = vunpack.c.h.b16 %v1354
  %v1667 = vunpack.c.l.b16 %v1355
  %v1668 = vunpack.c.h.b16 %v1355
  %v1669 = vunpack.c.l.b16 %v1356
  %v1670 = vunpack.c.h.b16 %v1356
  %v1671 = vunpack.c.l.b16 %v1357
  %v1672 = vunpack.c.h.b16 %v1357
  %v1673 = vunpack.c.l.b16 %v1358
  %v1674 = vunpack.c.h.b16 %v1358
  %v1675 = vunpack.c.l.b16 %v1359
  %v1676 = vunpack.c.h.b16 %v1359
  %v1677 = vunpack.c.l.b16 %v1360
  %v1678 = vunpack.c.h.b16 %v1360
  %v1679 = vunpack.c.l.b16 %v1361
  %v1680 = vunpack.c.h.b16 %v1361
  %v1681 = vunpack.c.l.b16 %v1362
  %v1682 = vunpack.c.h.b16 %v1362
  %v1683 = vunpack.c.l.b16 %v1363
  %v1684 = vunpack.c.h.b16 %v1363
  %v1685 = vunpack.c.l.b16 %v1364
  %v1686 = vunpack.c.h.b16 %v1364
  %v1687 = vunpack.c.l.b16 %v1365
  %v1688 = vunpack.c.h.b16 %v1365
  %v1689 = vunpack.c.l.b16 %v1366
  %v1690 = vunpack.c.h.b16 %v1366
  %v1691 = vunpack.c.l.b16 %v1367
  %v1692 = vunpack.c.h.b16 %v1367
  %v1693 = vunpack.c.l.b16 %v1368
  %v1694 = vunpack.c.h.b16 %v1368
  %v1695 = vunpack.c.l.b16 %v1369
  %v1696 = vunpack.c.h.b16 %v1369
  %v1697 = vunpack.c.l.b16 %v1370
  %v1698 = vunpack.c.h.b16 %v1370
  %v1699 = vunpack.c.l.b16 %v1371
  %v1700 = vunpack.c.h.b16 %v1371
  %v1701 = vunpack.c.l.b16 %v1372
  %v1702 = vunpack.c.h.b16 %v1372
  %v1703 = vunpack.c.l.b16 %v1373
  %v1704 = vunpack.c.h.b16 %v1373
  %v1705 = vunpack.c.l.b16 %v1374
  %v1706 = vunpack.c.h.b16 %v1374
  %v1707 = vunpack.c.l.b16 %v1375
  %v1708 = vunpack.c.h.b16 %v1375
  %v1709 = vunpack.c.l.b16 %v1376
  %v1710 = vunpack.c.h.b16 %v1376
  %v1711 = vunpack.c.l.b16 %v1377
  %v1712 = vunpack.c.h.b16 %v1377
  %v1713 = vunpack.c.l.b16 %v1378
  %v1714 = vunpack.c.h.b16 %v1378
  %v1715 = vunpack.c.l.b16 %v1379
  %v1716 = vunpack.c.h.b16 %v1379
  %v1717 = vunpack.c.l.b16 %v1380
  %v1718 = vunpack.c.h.b16 %v1380
  %v1719 = vunpack.c.l.b16 %v1381
  %v1720 = vunpack.c.h.b16 %v1381
  %v1721 = vunpack.c.l.b16 %v1382
  %v1722 = vunpack.c.h.b16 %v1382
  %v1723 = vunpack.c.l.b16 %v1383
  %v1724 = vunpack.c.h.b16 %v1383
  %v1725 = vunpack.c.l.b16 %v1384
  %v1726 = vunpack.c.h.b16 %v1384
  %v1727 = vunpack.c.l.b16 %v1385
  %v1728 = vunpack.c.h.b16 %v1385
  %v1729 = vunpack.c.l.b16 %v1386
  %v1730 = vunpack.c.h.b16 %v1386
  %v1731 = vunpack.c.l.b16 %v1387
  %v1732 = vunpack.c.h.b16 %v1387
  %v1733 = vunpack.c.l.b16 %v1388
  %v1734 = vunpack.c.h.b16 %v1388
  %v1735 = vunpack.c.l.b16 %v1389
  %v1736 = vunpack.c.h.b16 %v1389
  %v1737 = vunpack.c.l.b16 %v1390
  %v1738 = vunpack.c.h.b16 %v1390
  %v1739 = vunpack.c.l.b16 %v1391
  %v1740 = vunpack.c.h.b16 %v1391
  %v1741 = vunpack.c.l.b16 %v1392
  %v1742 = vunpack.c.h.b16 %v1392
  %v1743 = vunpack.c.l.b16 %v1393
  %v1744 = vunpack.c.h.b16 %v1393
  %v1745 = vunpack.c.l.b16 %v1394
  %v1746 = vunpack.c.h.b16 %v1394
  %v1747 = vunpack.c.l.b16 %v1395
  %v1748 = vunpack.c.h.b16 %v1395
  %v1749 = vunpack.c.l.b16 %v1396
  %v1750 = vunpack.c.h.b16 %v1396
  %v1751 = vunpack.c.l.b16 %v1397
  %v1752 = vunpack.c.h.b16 %v1397
  %v1753 = vunpack.c.l.b16 %v1398
  %v1754 = vunpack.c.h.b16 %v1398
  %v1755 = vunpack.c.l.b16 %v1399
  %v1756 = vunpack.c.h.b16 %v1399
  %v1757 = vunpack.c.l.b16 %v1400
  %v1758 = vunpack.c.h.b16 %v1400
  %v1759 = vunpack.c.l.b16 %v1401
  %v1760 = vunpack.c.h.b16 %v1401
  %v1761 = vunpack.c.l.b16 %v1402
  %v1762 = vunpack.c.h.b16 %v1402
  %v1763 = vunpack.c.l.b16 %v1403
  %v1764 = vunpack.c.h.b16 %v1403
  %v1765 = vunpack.c.l.b16 %v1404
  %v1766 = vunpack.c.h.b16 %v1404
  %v1767 = vunpack.c.l.b16 %v1405
  %v1768 = vunpack.c.h.b16 %v1405
  %v1769 = vunpack.c.l.b16 %v1406
  %v1770 = vunpack.c.h.b16 %v1406
  %v1771 = vunpack.c.l.b16 %v1407
  %v1772 = vunpack.c.h.b16 %v1407
  %v1773 = vunpack.c.l.b16 %v1408
  %v1774 = vunpack.c.h.b16 %v1408
  %v1775 = vunpack.c.l.b16 %v1409
  %v1776 = vunpack.c.h.b16 %v1409
  %v1777 = vunpack.c.l.b16 %v1410
  %v1778 = vunpack.c.h.b16 %v1410
  %v1779 = vunpack.c.l.b16 %v1411
  %v1780 = vunpack.c.h.b16 %v1411
  %v1781 = vunpack.c.l.b16 %v1412
  %v1782 = vunpack.c.h.b16 %v1412
  %v1783 = vunpack.c.l.b16 %v1413
  %v1784 = vunpack.c.h.b16 %v1413
  %v1785 = vunpack.c.l.b16 %v1414
  %v1786 = vunpack.c.h.b16 %v1414
  %v1787 = vunpack.c.l.b16 %v1415
  %v1788 = vunpack.c.h.b16 %v1415
  %v1789 = vunpack.c.l.b16 %v1416
  %v1790 = vunpack.c.h.b16 %v1416
  %v1791 = vunpack.c.l.b16 %v1417
  %v1792 = vunpack.c.h.b16 %v1417
  %v1793 = vunpack.c.l.b16 %v1418
  %v1794 = vunpack.c.h.b16 %v1418
  %v1795 = vunpack.c.l.b16 %v1419
  %v1796 = vunpack.c.h.b16 %v1419
  %v1797 = vunpack.c.l.b16 %v1420
  %v1798 = vunpack.c.h.b16 %v1420
  %v1799 = vunpack.c.l.b16 %v1421
  %v1800 = vunpack.c.h.b16 %v1421
  %v1801 = vunpack.c.l.b16 %v1422
  %v1802 = vunpack.c.h.b16 %v1422
  %v1803 = vunpack.c.l.b16 %v1423
  %v1804 = vunpack.c.h.b16 %v1423
  %v1805 = vunpack.c.l.b16 %v1424
  %v1806 = vunpack.c.h.b16 %v1424
  %v1807 = vunpack.c.l.b16 %v1425
  %v1808 = vunpack.c.h.b16 %v1425
  %v1809 = vunpack.c.l.b16 %v1426
  %v1810 = vunpack.c.h.b16 %v1426
  %v1811 = vunpack.c.l.b16 %v1427
  %v1812 = vunpack.c.h.b16 %v1427
  %v1813 = vunpack.c.l.b16 %v1428
  %v1814 = vunpack.c.h.b16 %v1428
  %v1815 = vunpack.c.l.b16 %v1429
  %v1816 = vunpack.c.h.b16 %v1429
  %v1817 = vunpack.c.l.b16 %v1430
  %v1818 = vunpack.c.h.b16 %v1430
  %v1819 = vunpack.c.l.b16 %v1431
  %v1820 = vunpack.c.h.b16 %v1431
  %v1821 = vunpack.c.l.b16 %v1432
  %v1822 = vunpack.c.h.b16 %v1432
  %v1823 = vunpack.c.l.b16 %v1433
  %v1824 = vunpack.c.h.b16 %v1433
  %v1825 = vunpack.c.l.b16 %v1434
  %v1826 = vunpack.c.h.b16 %v1434
  %v1827 = vunpack.c.l.b16 %v1435
  %v1828 = vunpack.c.h.b16 %v1435
  %v1829 = vunpack.c.l.b16 %v1436
  %v1830 = vunpack.c.h.b16 %v1436
  %v1831 = vunpack.c.l.b16 %v1437
  %v1832 = vunpack.c.h.b16 %v1437
  %v1833 = vunpack.c.l.b16 %v1438
  %v1834 = vunpack.c.h.b16 %v1438
  %v1835 = vunpack.c.l.b16 %v1439
  %v1836 = vunpack.c.h.b16 %v1439
  %v1837 = vunpack.c.l.b16 %v1440
  %v1838 = vunpack.c.h.b16 %v1440
  %v1839 = vunpack.c.l.b16 %v1441
  %v1840 = vunpack.c.h.b16 %v1441
  %v1841 = vunpack.c.l.b16 %v1442
  %v1842 = vunpack.c.h.b16 %v1442
  %v1843 = vunpack.c.l.b16 %v1443
  %v1844 = vunpack.c.h.b16 %v1443
  %v1845 = vunpack.c.l.b16 %v1444
  %v1846 = vunpack.c.h.b16 %v1444
  %v1847 = vunpack.c.l.b16 %v1445
  %v1848 = vunpack.c.h.b16 %v1445
  %v1849 = vunpack.c.l.b16 %v1446
  %v1850 = vunpack.c.h.b16 %v1446
  %v1851 = vunpack.c.l.b16 %v1447
  %v1852 = vunpack.c.h.b16 %v1447
  %v1853 = vunpack.c.l.b16 %v1448
  %v1854 = vunpack.c.h.b16 %v1448
  %v1855 = vunpack.c.l.b16 %v1449
  %v1856 = vunpack.c.h.b16 %v1449
  %v1857 = vunpack.c.l.b16 %v1450
  %v1858 = vunpack.c.h.b16 %v1450
  %v1859 = vunpack.c.l.b16 %v1451
  %v1860 = vunpack.c.h.b16 %v1451
  %v1861 = vunpack.c.l.b16 %v1452
  %v1862 = vunpack.c.h.b16 %v1452
  %v1863 = vunpack.c.l.b16 %v1453
  %v1864 = vunpack.c.h.b16 %v1453
  %v1865 = vunpack.c.l.b16 %v1454
  %v1866 = vunpack.c.h.b16 %v1454
  %v1867 = vunpack.c.l.b16 %v1455
  %v1868 = vunpack.c.h.b16 %v1455
  %v1869 = vunpack.c.l.b16 %v1456
  %v1870 = vunpack.c.h.b16 %v1456
  %v1871 = vunpack.c.l.b16 %v1457
  %v1872 = vunpack.c.h.b16 %v1457
  %v1873 = vunpack.c.l.b16 %v1458
  %v1874 = vunpack.c.h.b16 %v1458
  %v1875 = vunpack.c.l.b16 %v1459
  %v1876 = vunpack.c.h.b16 %v1459
  %v1877 = vunpack.c.l.b16 %v1460
  %v1878 = vunpack.c.h.b16 %v1460
  %v1879 = vunpack.c.l.b16 %v1461
  %v1880 = vunpack.c.h.b16 %v1461
  %v1881 = vunpack.c.l.b16 %v1462
  %v1882 = vunpack.c.h.b16 %v1462
  %v1883 = vunpack.c.l.b16 %v1463
  %v1884 = vunpack.c.h.b16 %v1463
  %v1885 = vunpack.c.l.b16 %v1464
  %v1886 = vunpack.c.h.b16 %v1464
  %v1887 = vunpack.c.l.b16 %v1465
  %v1888 = vunpack.c.h.b16 %v1465
  %v1889 = vunpack.c.l.b16 %v1466
  %v1890 = vunpack.c.h.b16 %v1466
  %v1891 = vunpack.c.l.b16 %v1467
  %v1892 = vunpack.c.h.b16 %v1467
  %v1893 = vunpack.c.l.b16 %v1468
  %v1894 = vunpack.c.h.b16 %v1468
  %v1895 = vunpack.c.l.b16 %v1469
  %v1896 = vunpack.c.h.b16 %v1469
  %v1897 = vunpack.c.l.b16 %v1470
  %v1898 = vunpack.c.h.b16 %v1470
  %v1899 = vunpack.c.l.b16 %v1471
  %v1900 = vunpack.c.h.b16 %v1471
  %v1901 = vunpack.c.l.b16 %v1472
  %v1902 = vunpack.c.h.b16 %v1472
  %v1903 = vunpack.c.l.b16 %v1473
  %v1904 = vunpack.c.h.b16 %v1473
  %v1905 = vunpack.c.l.b16 %v1474
  %v1906 = vunpack.c.h.b16 %v1474
  %v1907 = vunpack.c.l.b16 %v1475
  %v1908 = vunpack.c.h.b16 %v1475
  %v1909 = vunpack.c.l.b16 %v1476
  %v1910 = vunpack.c.h.b16 %v1476
  %v1911 = vunpack.c.l.b16 %v1477
  %v1912 = vunpack.c.h.b16 %v1477
  %v1913 = vunpack.c.l.b16 %v1478
  %v1914 = vunpack.c.h.b16 %v1478
  %v1915 = vunpack.c.l.b16 %v1479
  %v1916 = vunpack.c.h.b16 %v1479
  %v1917 = vunpack.c.l.b16 %v1480
  %v1918 = vunpack.c.h.b16 %v1480
  %v1919 = vunpack.c.l.b16 %v1481
  %v1920 = vunpack.c.h.b16 %v1481
  %v1921 = vunpack.c.l.b16 %v1482
  %v1922 = vunpack.c.h.b16 %v1482
  %v1923 = vunpack.c.l.b16 %v1483
  %v1924 = vunpack.c.h.b16 %v1483
  %v1925 = vunpack.c.l.b16 %v1484
  %v1926 = vunpack.c.h.b16 %v1484
  %v1927 = vunpack.c.l.b16 %v1485
  %v1928 = vunpack.c.h.b16 %v1485
  %v1929 = vunpack.c.l.b16 %v1486
  %v1930 = vunpack.c.h.b16 %v1486
  %v1931 = vunpack.c.l.b16 %v1487
  %v1932 = vunpack.c.h.b16 %v1487
  %v1933 = vunpack.c.l.b16 %v1488
  %v1934 = vunpack.c.h.b16 %v1488
  %v1935 = vunpack.c.l.b16 %v1489
  %v1936 = vunpack.c.h.b16 %v1489
  %v1937 = vunpack.c.l.b16 %v1490
  %v1938 = vunpack.c.h.b16 %v1490
  %v1939 = vunpack.c.l.b16 %v1491
  %v1940 = vunpack.c.h.b16 %v1491
  %v1941 = vunpack.c.l.b16 %v1492
  %v1942 = vunpack.c.h.b16 %v1492
  %v1943 = vunpack.c.l.b16 %v1493
  %v1944 = vunpack.c.h.b16 %v1493
  %v1945 = vunpack.c.l.b16 %v1494
  %v1946 = vunpack.c.h.b16 %v1494
  %v1947 = vunpack.c.l.b16 %v1495
  %v1948 = vunpack.c.h.b16 %v1495
  %v1949 = vunpack.c.l.b16 %v1496
  %v1950 = vunpack.c.h.b16 %v1496
  %v1951 = vpack.c.b16 %v1667, %v1663
  %v1952 = vpack.c.b16 %v1668, %v1664
  %v1953 = vpack.c.b16 %v1669, %v1665
  %v1954 = vpack.c.b16 %v1670, %v1666
  %v1955 = vpack.c.b16 %v1675, %v1671
  %v1956 = vpack.c.b16 %v1676, %v1672
  %v1957 = vpack.c.b16 %v1677, %v1673
  %v1958 = vpack.c.b16 %v1678, %v1674
  %v1959 = vpack.c.b16 %v1683, %v1679
  %v1960 = vpack.c.b16 %v1684, %v1680
  %v1961 = vpack.c.b16 %v1685, %v1681
  %v1962 = vpack.c.b16 %v1686, %v1682
  %v1963 = vpack.c.b16 %v1691, %v1687
  %v1964 = vpack.c.b16 %v1692, %v1688
  %v1965 = vpack.c.b16 %v1693, %v1689
  %v1966 = vpack.c.b16 %v1694, %v1690
  %v1967 = vpack.c.b16 %v1699, %v1695
  %v1968 = vpack.c.b16 %v1700, %v1696
  %v1969 = vpack.c.b16 %v1701, %v1697
  %v1970 = vpack.c.b16 %v1702, %v1698
  %v1971 = vpack.c.b16 %v1707, %v1703
  %v1972 = vpack.c.b16 %v1708, %v1704
  %v1973 = vpack.c.b16 %v1709, %v1705
  %v1974 = vpack.c.b16 %v1710, %v1706
  %v1975 = vpack.c.b16 %v1715, %v1711
  %v1976 = vpack.c.b16 %v1716, %v1712
  %v1977 = vpack.c.b16 %v1717, %v1713
  %v1978 = vpack.c.b16 %v1718, %v1714
  %v1979 = vpack.c.b16 %v1723, %v1719
  %v1980 = vpack.c.b16 %v1724, %v1720
  %v1981 = vpack.c.b16 %v1725, %v1721
  %v1982 = vpack.c.b16 %v1726, %v1722
  %v1983 = vpack.c.b16 %v1731, %v1727
  %v1984 = vpack.c.b16 %v1732, %v1728
  %v1985 = vpack.c.b16 %v1733, %v1729
  %v1986 = vpack.c.b16 %v1734, %v1730
  %v1987 = vpack.c.b16 %v1739, %v1735
  %v1988 = vpack.c.b16 %v1740, %v1736
  %v1989 = vpack.c.b16 %v1741, %v1737
  %v1990 = vpack.c.b16 %v1742, %v1738
  %v1991 = vpack.c.b16 %v1747, %v1743
  %v1992 = vpack.c.b16 %v1748, %v1744
  %v1993 = vpack.c.b16 %v1749, %v1745
  %v1994 = vpack.c.b16 %v1750, %v1746
  %v1995 = vpack.c.b16 %v1755, %v1751
  %v1996 = vpack.c.b16 %v1756, %v1752
  %v1997 = vpack.c.b16 %v1757, %v1753
  %v1998 = vpack.c.b16 %v1758, %v1754
  %v1999 = vpack.c.b16 %v1763, %v1759
  %v2000 = vpack.c.b16 %v1764, %v1760
  %v2001 = vpack.c.b16 %v1765, %v1761
  %v2002 = vpack.c.b16 %v1766, %v1762
  %v2003 = vpack.c.b16 %v1771, %v1767
  %v2004 = vpack.c.b16 %v1772, %v1768
  %v2005 = vpack.c.b16 %v1773, %v1769
  %v2006 = vpack.c.b16 %v1774, %v1770
  %v2007 = vpack.c.b16 %v1779, %v1775
  %v2008 = vpack.c.b16 %v1780, %v1776
  %v2009 = vpack.c.b16 %v1781, %v1777
  %v2010 = vpack.c.b16 %v1782, %v1778
  %v2011 = vpack.c.b16 %v1787, %v1783
  %v2012 = vpack.c.b16 %v1788, %v1784
  %v2013 = vpack.c.b16 %v1789, %v1785
  %v2014 = vpack.c.b16 %v1790, %v1786
  %v2015 = vpack.c.b16 %v1795, %v1791
  %v2016 = vpack.c.b16 %v1796, %v1792
  %v2017 = vpack.c.b16 %v1797, %v1793
  %v2018 = vpack.c.b16 %v1798, %v1794
  %v2019 = vpack.c.b16 %v1803, %v1799
  %v2020 = vpack.c.b16 %v1804, %v1800
  %v2021 = vpack.c.b16 %v1805, %v1801
  %v2022 = vpack.c.b16 %v1806, %v1802
  %v2023 = vpack.c.b16 %v1811, %v1807
  %v2024 = vpack.c.b16 %v1812, %v1808
  %v2025 = vpack.c.b16 %v1813, %v1809
  %v2026 = vpack.c.b16 %v1814, %v1810
  %v2027 = vpack.c.b16 %v1819, %v1815
  %v2028 = vpack.c.b16 %v1820, %v1816
  %v2029 = vpack.c.b16 %v1821, %v1817
  %v2030 = vpack.c.b16 %v1822, %v1818
  %v2031 = vpack.c.b16 %v1827, %v1823
  %v2032 = vpack.c.b16 %v1828, %v1824
  %v2033 = vpack.c.b16 %v1829, %v1825
  %v2034 = vpack.c.b16 %v1830, %v1826
  %v2035 = vpack.c.b16 %v1835, %v1831
  %v2036 = vpack.c.b16 %v1836, %v1832
  %v2037 = vpack.c.b16 %v1837, %v1833
  %v2038 = vpack.c.b16 %v1838, %v1834
  %v2039 = vpack.c.b16 %v1843, %v1839
  %v2040 = vpack.c.b16 %v1844, %v1840
  %v2041 = vpack.c.b16 %v1845, %v1841
  %v2042 = vpack.c.b16 %v1846, %v1842
  %v2043 = vpack.c.b16 %v1851, %v1847
  %v2044 = vpack.c.b16 %v1852, %v1848
  %v2045 = vpack.c.b16 %v1853, %v1849
  %v2046 = vpack.c.b16 %v1854, %v1850
  %v2047 = vpack.c.b16 %v1859, %v1855
  %v2048 = vpack.c.b16 %v1860, %v1856
  %v2049 = vpack.c.b16 %v1861, %v1857
  %v2050 = vpack.c.b16 %v1862, %v1858
  %v2051 = vpack.c.b16 %v1867, %v1863
  %v2052 = vpack.c.b16 %v1868, %v1864
  %v2053 = vpack.c.b16 %v1869, %v1865
  %v2054 = vpack.c.b16 %v1870, %v1866
  %v2055 = vpack.c.b16 %v1875, %v1871
  %v2056 = vpack.c.b16 %v1876, %v1872
  %v2057 = vpack.c.b16 %v1877, %v1873
  %v2058 = vpack.c.b16 %v1878, %v1874
  %v2059 = vpack.c.b16 %v1883, %v1879
  %v2060 = vpack.c.b16 %v1884, %v1880
  %v2061 = vpack.c.b16 %v1885, %v1881
  %v2062 = vpack.c.b16 %v1886, %v1882
  %v2063 = vpack.c.b16 %v1891, %v1887
  %v2064 = vpack.c.b16 %v1892, %v1888
  %v2065 = vpack.c.b16 %v1893, %v1889
  %v2066 = vpack.c.b16 %v1894, %v1890
  %v2067 = vpack.c.b16 %v1899, %v1895
  %v2068 = vpack.c.b16 %v1900, %v1896
  %v2069 = vpack.c.b16 %v1901, %v1897
  %v2070 = vpack.c.b16 %v1902, %v1898
  %v2071 = vpack.c.b16 %v1907, %v1903
  %v2072 = vpack.c.b16 %v1908, %v1904
  %v2073 = vpack.c.b16 %v1909, %v1905
  %v2074 = vpack.c.b16 %v1910, %v1906
  %v2075 = vpack.c.b16 %v1915, %v1911
  %v2076 = vpack.c.b16 %v1916, %v1912
  %v2077 = vpack.c.b16 %v1917, %v1913
  %v2078 = vpack.c.b16 %v1918, %v1914
  %v2079 = vpack.c.b16 %v1923, %v1919
  %v2080 = vpack.c.b16 %v1924, %v1920
  %v2081 = vpack.c.b16 %v1925, %v1921
  %v2082 = vpack.c.b16 %v1926, %v1922
  %v2083 = vpack.c.b16 %v1931, %v1927
  %v2084 = vpack.c.b16 %v1932, %v1928
  %v2085 = vpack.c.b16 %v1933, %v1929
  %v2086 = vpack.c.b16 %v1934, %v1930
  %v2087 = vpack.c.b16 %v1939, %v1935
  %v2088 = vpack.c.b16 %v1940, %v1936
  %v2089 = vpack.c.b16 %v1941, %v1937
  %v2090 = vpack.c.b16 %v1942, %v1938
  %v2091 = vpack.c.b16 %v1947, %v1943
  %v2092 = vpack.c.b16 %v1948, %v1944
  %v2093 = vpack.c.b16 %v1949, %v1945
  %v2094 = vpack.c.b16 %v1950, %v1946
  %vm2239 = vcmask 523264
  %v2241 = vsel %vm2239, %v1352, 0
  %2243 = vmatprep.subr.bf16.mxu0 %v1952
  %2244 = vmatpush1.bf16.msra.mxu0 %v1951
  %2245 = vmatprep.subr.bf16.mxu0 %v1956
  %2246 = vmatpush1.bf16.msra.mxu0 %v1955
  %2247 = vmatprep.subr.bf16.mxu0 %v1960
  %2248 = vmatpush1.bf16.msra.mxu0 %v1959
  %2249 = vmatprep.subr.bf16.mxu0 %v1964
  %2250 = vmatpush1.bf16.msra.mxu0 %v1963
  %2251 = vmatprep.subr.bf16.mxu0 %v1968
  %2252 = vmatpush1.bf16.msra.mxu0 %v1967
  %2253 = vmatprep.subr.bf16.mxu0 %v1972
  %2254 = vmatpush1.bf16.msra.mxu0 %v1971
  %2255 = vmatprep.subr.bf16.mxu0 %v1976
  %2256 = vmatpush1.bf16.msra.mxu0 %v1975
  %2257 = vmatprep.subr.bf16.mxu0 %v1980
  %2258 = vmatpush1.bf16.msra.mxu0 %v1979
  %2259 = vmatprep.subr.bf16.mxu0 %v1984
  %2260 = vmatpush1.bf16.msra.mxu0 %v1983
  %2261 = vmatprep.subr.bf16.mxu0 %v1988
  %2262 = vmatpush1.bf16.msra.mxu0 %v1987
  %2263 = vmatprep.subr.bf16.mxu0 %v1992
  %2264 = vmatpush1.bf16.msra.mxu0 %v1991
  %2265 = vmatprep.subr.bf16.mxu0 %v1996
  %2266 = vmatpush1.bf16.msra.mxu0 %v1995
  %2267 = vmatprep.subr.bf16.mxu0 %v2000
  %2268 = vmatpush1.bf16.msra.mxu0 %v1999
  %2269 = vmatprep.subr.bf16.mxu0 %v2004
  %2270 = vmatpush1.bf16.msra.mxu0 %v2003
  %2271 = vmatprep.subr.bf16.mxu0 %v2008
  %2272 = vmatpush1.bf16.msra.mxu0 %v2007
  %2273 = vmatprep.subr.bf16.mxu0 %v2012
  %2274 = vmatpush1.bf16.msra.mxu0 %v2011
  %2275 = vmatprep.mubr.bf16.mxu0 %v1349
  %2276 = vmatmul.mubr.bf16.gmra.mrb[0].mxu0 %v1348
  %v2277 = vpop.f32.mrb[0].mxu0
  %v2278 = vadd.f32 %v1502, %v2277
  %v2279 = vpop.f32.mrb[0].mxu0
  %v2280 = vadd.f32 %v1506, %v2279
  %v2281 = vpop.f32.mrb[0].mxu0
  %v2282 = vpop.f32.mrb[0].mxu0
  %2283 = vdwg.mxu0
  %2284 = vmatprep.subr.bf16.mxu0 %v2016
  %2285 = vmatpush1.bf16.msra.mxu0 %v2015
  %2286 = vmatprep.subr.bf16.mxu0 %v2020
  %2287 = vmatpush1.bf16.msra.mxu0 %v2019
  %2288 = vmatprep.subr.bf16.mxu0 %v2024
  %2289 = vmatpush1.bf16.msra.mxu0 %v2023
  %2290 = vmatprep.subr.bf16.mxu0 %v2028
  %2291 = vmatpush1.bf16.msra.mxu0 %v2027
  %2292 = vmatprep.subr.bf16.mxu0 %v2032
  %2293 = vmatpush1.bf16.msra.mxu0 %v2031
  %2294 = vmatprep.subr.bf16.mxu0 %v2036
  %2295 = vmatpush1.bf16.msra.mxu0 %v2035
  %2296 = vmatprep.subr.bf16.mxu0 %v2040
  %2297 = vmatpush1.bf16.msra.mxu0 %v2039
  %2298 = vmatprep.subr.bf16.mxu0 %v2044
  %2299 = vmatpush1.bf16.msra.mxu0 %v2043
  %2300 = vmatprep.subr.bf16.mxu0 %v2048
  %2301 = vmatpush1.bf16.msra.mxu0 %v2047
  %2302 = vmatprep.subr.bf16.mxu0 %v2052
  %2303 = vmatpush1.bf16.msra.mxu0 %v2051
  %2304 = vmatprep.subr.bf16.mxu0 %v2056
  %2305 = vmatpush1.bf16.msra.mxu0 %v2055
  %2306 = vmatprep.subr.bf16.mxu0 %v2060
  %2307 = vmatpush1.bf16.msra.mxu0 %v2059
  %2308 = vmatprep.subr.bf16.mxu0 %v2064
  %2309 = vmatpush1.bf16.msra.mxu0 %v2063
  %2310 = vmatprep.subr.bf16.mxu0 %v2068
  %2311 = vmatpush1.bf16.msra.mxu0 %v2067
  %2312 = vmatprep.subr.bf16.mxu0 %v2072
  %2313 = vmatpush1.bf16.msra.mxu0 %v2071
  %2314 = vmatprep.subr.bf16.mxu0 %v2076
  %2315 = vmatpush1.bf16.msra.mxu0 %v2075
  %2316 = vmatprep.mubr.bf16.mxu0 %v1351
  %2317 = vmatmul.mubr.bf16.gmra.mrb[0].mxu0 %v1350
  %v2318 = vpop.f32.mrb[0].mxu0
  %v2319 = vadd.f32 %v2278, %v2318
  %v2320 = vpop.f32.mrb[0].mxu0
  %v2321 = vadd.f32 %v2280, %v2320
  %v2322 = vpop.f32.mrb[0].mxu0
  %v2323 = vpop.f32.mrb[0].mxu0
  %2324 = vdwg.mxu0
  %2325 = vmatprep.subr.bf16.mxu0 %v2080
  %2326 = vmatpush1.bf16.msra.mxu0 %v2079
  %2327 = vmatprep.subr.bf16.mxu0 %v2084
  %2328 = vmatpush1.bf16.msra.mxu0 %v2083
  %2329 = vmatprep.subr.bf16.mxu0 %v2088
  %2330 = vmatpush1.bf16.msra.mxu0 %v2087
  %2331 = vmatprep.subr.bf16.mxu0 %v2092
  %2332 = vmatpush1.bf16.msra.mxu0 %v2091
  %2333 = vmatprep.subr.bf16.mxu0 0
  %2334 = vmatpush1.bf16.msra.mxu0 0
  %2335 = vmatprep.subr.bf16.mxu0 0
  %2336 = vmatpush1.bf16.msra.mxu0 0
  %2337 = vmatprep.subr.bf16.mxu0 0
  %2338 = vmatpush1.bf16.msra.mxu0 0
  %2339 = vmatprep.subr.bf16.mxu0 0
  %2340 = vmatpush1.bf16.msra.mxu0 0
  %2341 = vmatprep.subr.bf16.mxu0 0
  %2342 = vmatpush1.bf16.msra.mxu0 0
  %2343 = vmatprep.subr.bf16.mxu0 0
  %2344 = vmatpush1.bf16.msra.mxu0 0
  %2345 = vmatprep.subr.bf16.mxu0 0
  %2346 = vmatpush1.bf16.msra.mxu0 0
  %2347 = vmatprep.subr.bf16.mxu0 0
  %2348 = vmatpush1.bf16.msra.mxu0 0
  %2349 = vmatprep.subr.bf16.mxu0 0
  %2350 = vmatpush1.bf16.msra.mxu0 0
  %2351 = vmatprep.subr.bf16.mxu0 0
  %2352 = vmatpush1.bf16.msra.mxu0 0
  %2353 = vmatprep.subr.bf16.mxu0 0
  %2354 = vmatpush1.bf16.msra.mxu0 0
  %2355 = vmatprep.subr.bf16.mxu0 0
  %2356 = vmatpush1.bf16.msra.mxu0 0
  %2357 = vmatprep.mubr.bf16.mxu0 0
  %2358 = vmatmul.mubr.bf16.gmra.mrb[0].mxu0 %v2241
  %v2359 = vpop.f32.mrb[0].mxu0
  %v2360 = vadd.f32 %v2319, %v2359
  %v2361 = vpop.f32.mrb[0].mxu0
  %v2362 = vadd.f32 %v2321, %v2361
  %v2363 = vpop.f32.mrb[0].mxu0
  %v2364 = vpop.f32.mrb[0].mxu0
  %2365 = vdwg.mxu0
  %2366 = vmatprep.subr.bf16.mxu0 %v1954
  %2367 = vmatpush1.bf16.msra.mxu0 %v1953
  %2368 = vmatprep.subr.bf16.mxu0 %v1958
  %2369 = vmatpush1.bf16.msra.mxu0 %v1957
  %2370 = vmatprep.subr.bf16.mxu0 %v1962
  %2371 = vmatpush1.bf16.msra.mxu0 %v1961
  %2372 = vmatprep.subr.bf16.mxu0 %v1966
  %2373 = vmatpush1.bf16.msra.mxu0 %v1965
  %2374 = vmatprep.subr.bf16.mxu0 %v1970
  %2375 = vmatpush1.bf16.msra.mxu0 %v1969
  %2376 = vmatprep.subr.bf16.mxu0 %v1974
  %2377 = vmatpush1.bf16.msra.mxu0 %v1973
  %2378 = vmatprep.subr.bf16.mxu0 %v1978
  %2379 = vmatpush1.bf16.msra.mxu0 %v1977
  %2380 = vmatprep.subr.bf16.mxu0 %v1982
  %2381 = vmatpush1.bf16.msra.mxu0 %v1981
  %2382 = vmatprep.subr.bf16.mxu0 %v1986
  %2383 = vmatpush1.bf16.msra.mxu0 %v1985
  %2384 = vmatprep.subr.bf16.mxu0 %v1990
  %2385 = vmatpush1.bf16.msra.mxu0 %v1989
  %2386 = vmatprep.subr.bf16.mxu0 %v1994
  %2387 = vmatpush1.bf16.msra.mxu0 %v1993
  %2388 = vmatprep.subr.bf16.mxu0 %v1998
  %2389 = vmatpush1.bf16.msra.mxu0 %v1997
  %2390 = vmatprep.subr.bf16.mxu0 %v2002
  %2391 = vmatpush1.bf16.msra.mxu0 %v2001
  %2392 = vmatprep.subr.bf16.mxu0 %v2006
  %2393 = vmatpush1.bf16.msra.mxu0 %v2005
  %2394 = vmatprep.subr.bf16.mxu0 %v2010
  %2395 = vmatpush1.bf16.msra.mxu0 %v2009
  %2396 = vmatprep.subr.bf16.mxu0 %v2014
  %2397 = vmatpush1.bf16.msra.mxu0 %v2013
  %2398 = vmatprep.mubr.bf16.mxu0 %v1349
  %2399 = vmatmul.mubr.bf16.gmra.mrb[0].mxu0 %v1348
  %v2400 = vpop.f32.mrb[0].mxu0
  %v2401 = vadd.f32 %v1510, %v2400
  %v2402 = vpop.f32.mrb[0].mxu0
  %v2403 = vadd.f32 %v1514, %v2402
  %v2404 = vpop.f32.mrb[0].mxu0
  %v2405 = vpop.f32.mrb[0].mxu0
  %2406 = vdwg.mxu0
  %2407 = vmatprep.subr.bf16.mxu0 %v2018
  %2408 = vmatpush1.bf16.msra.mxu0 %v2017
  %2409 = vmatprep.subr.bf16.mxu0 %v2022
  %2410 = vmatpush1.bf16.msra.mxu0 %v2021
  %2411 = vmatprep.subr.bf16.mxu0 %v2026
  %2412 = vmatpush1.bf16.msra.mxu0 %v2025
  %2413 = vmatprep.subr.bf16.mxu0 %v2030
  %2414 = vmatpush1.bf16.msra.mxu0 %v2029
  %2415 = vmatprep.subr.bf16.mxu0 %v2034
  %2416 = vmatpush1.bf16.msra.mxu0 %v2033
  %2417 = vmatprep.subr.bf16.mxu0 %v2038
  %2418 = vmatpush1.bf16.msra.mxu0 %v2037
  %2419 = vmatprep.subr.bf16.mxu0 %v2042
  %2420 = vmatpush1.bf16.msra.mxu0 %v2041
  %2421 = vmatprep.subr.bf16.mxu0 %v2046
  %2422 = vmatpush1.bf16.msra.mxu0 %v2045
  %2423 = vmatprep.subr.bf16.mxu0 %v2050
  %2424 = vmatpush1.bf16.msra.mxu0 %v2049
  %2425 = vmatprep.subr.bf16.mxu0 %v2054
  %2426 = vmatpush1.bf16.msra.mxu0 %v2053
  %2427 = vmatprep.subr.bf16.mxu0 %v2058
  %2428 = vmatpush1.bf16.msra.mxu0 %v2057
  %2429 = vmatprep.subr.bf16.mxu0 %v2062
  %2430 = vmatpush1.bf16.msra.mxu0 %v2061
  %2431 = vmatprep.subr.bf16.mxu0 %v2066
  %2432 = vmatpush1.bf16.msra.mxu0 %v2065
  %2433 = vmatprep.subr.bf16.mxu0 %v2070
  %2434 = vmatpush1.bf16.msra.mxu0 %v2069
  %2435 = vmatprep.subr.bf16.mxu0 %v2074
  %2436 = vmatpush1.bf16.msra.mxu0 %v2073
  %2437 = vmatprep.subr.bf16.mxu0 %v2078
  %2438 = vmatpush1.bf16.msra.mxu0 %v2077
  %2439 = vmatprep.mubr.bf16.mxu0 %v1351
  %2440 = vmatmul.mubr.bf16.gmra.mrb[0].mxu0 %v1350
  %v2441 = vpop.f32.mrb[0].mxu0
  %v2442 = vadd.f32 %v2401, %v2441
  %v2443 = vpop.f32.mrb[0].mxu0
  %v2444 = vadd.f32 %v2403, %v2443
  %v2445 = vpop.f32.mrb[0].mxu0
  %v2446 = vpop.f32.mrb[0].mxu0
  %2447 = vdwg.mxu0
  %2448 = vmatprep.subr.bf16.mxu0 %v2082
  %2449 = vmatpush1.bf16.msra.mxu0 %v2081
  %2450 = vmatprep.subr.bf16.mxu0 %v2086
  %2451 = vmatpush1.bf16.msra.mxu0 %v2085
  %2452 = vmatprep.subr.bf16.mxu0 %v2090
  %2453 = vmatpush1.bf16.msra.mxu0 %v2089
  %2454 = vmatprep.subr.bf16.mxu0 %v2094
  %2455 = vmatpush1.bf16.msra.mxu0 %v2093
  %2456 = vmatprep.subr.bf16.mxu0 0
  %2457 = vmatpush1.bf16.msra.mxu0 0
  %2458 = vmatprep.subr.bf16.mxu0 0
  %2459 = vmatpush1.bf16.msra.mxu0 0
  %2460 = vmatprep.subr.bf16.mxu0 0
  %2461 = vmatpush1.bf16.msra.mxu0 0
  %2462 = vmatprep.subr.bf16.mxu0 0
  %2463 = vmatpush1.bf16.msra.mxu0 0
  %2464 = vmatprep.subr.bf16.mxu0 0
  %2465 = vmatpush1.bf16.msra.mxu0 0
  %2466 = vmatprep.subr.bf16.mxu0 0
  %2467 = vmatpush1.bf16.msra.mxu0 0
  %2468 = vmatprep.subr.bf16.mxu0 0
  %2469 = vmatpush1.bf16.msra.mxu0 0
  %2470 = vmatprep.subr.bf16.mxu0 0
  %2471 = vmatpush1.bf16.msra.mxu0 0
  %2472 = vmatprep.subr.bf16.mxu0 0
  %2473 = vmatpush1.bf16.msra.mxu0 0
  %2474 = vmatprep.subr.bf16.mxu0 0
  %2475 = vmatpush1.bf16.msra.mxu0 0
  %2476 = vmatprep.subr.bf16.mxu0 0
  %2477 = vmatpush1.bf16.msra.mxu0 0
  %2478 = vmatprep.subr.bf16.mxu0 0
  %2479 = vmatpush1.bf16.msra.mxu0 0
  %2480 = vmatprep.mubr.bf16.mxu0 0
  %2481 = vmatmul.mubr.bf16.gmra.mrb[0].mxu0 %v2241
  %v2482 = vpop.f32.mrb[0].mxu0
  %v2483 = vadd.f32 %v2442, %v2482
  %v2484 = vpop.f32.mrb[0].mxu0
  %v2485 = vadd.f32 %v2444, %v2484
  %v2486 = vpop.f32.mrb[0].mxu0
  %v2487 = vpop.f32.mrb[0].mxu0
  %2488 = vdwg.mxu0
  %v2489 = vmax.f32 %v2360, 0.0
  %v2490 = vmax.f32 %v2362, 0.0
  %v2491 = vmax.f32 %v2483, 0.0
  %v2492 = vmax.f32 %v2485, 0.0
  %v2493 = vpack.c.bf16 %v2489, %v2489
  %v2494 = vpack.c.bf16 %v2490, %v2490
  %v2495 = vpack.c.bf16 %v2491, %v2491
  %v2496 = vpack.c.bf16 %v2492, %v2492
  %v2497 = vld [vmem:[%s7] sm:$0xf]
  %v2498 = vld [vmem:[%s7 + $0x4] sm:$0xf]
  %v2499 = vld [vmem:[%s7 + $0x8] sm:$0xf]
  %v2500 = vld [vmem:[%s7 + $0xc] sm:$0xf]
  %v2501 = vld [vmem:[%s7 + $0x10] sm:$0xf]
  %v2502 = vld [vmem:[%s7 + $0x14] sm:$0xf]
  %v2503 = vld [vmem:[%s7 + $0x18] sm:$0xf]
  %v2504 = vld [vmem:[%s7 + $0x1c] sm:$0xf]
  %v2505 = vld [vmem:[%s7 + $0x20] sm:$0xf]
  %v2506 = vld [vmem:[%s7 + $0x24] sm:$0xf]
  %v2507 = vld [vmem:[%s7 + $0x28] sm:$0xf]
  %v2508 = vld [vmem:[%s7 + $0x2c] sm:$0xf]
  %v2509 = vld [vmem:[%s7 + $0x30] sm:$0xf]
  %v2510 = vld [vmem:[%s7 + $0x34] sm:$0xf]
  %v2511 = vld [vmem:[%s7 + $0x38] sm:$0xf]
  %v2512 = vld [vmem:[%s7 + $0x3c] sm:$0xf]
  %v2513 = vld [vmem:[%s7 + $0x40] sm:$0xf]
  %v2514 = vld [vmem:[%s7 + $0x44] sm:$0xf]
  %v2515 = vld [vmem:[%s7 + $0x48] sm:$0xf]
  %v2516 = vld [vmem:[%s7 + $0x4c] sm:$0xf]
  %v2517 = vld [vmem:[%s7 + $0x50] sm:$0xf]
  %v2518 = vld [vmem:[%s7 + $0x54] sm:$0xf]
  %v2519 = vld [vmem:[%s7 + $0x58] sm:$0xf]
  %v2520 = vld [vmem:[%s7 + $0x5c] sm:$0xf]
  %v2521 = vld [vmem:[%s7 + $0x60] sm:$0xf]
  %v2522 = vld [vmem:[%s7 + $0x64] sm:$0xf]
  %v2523 = vld [vmem:[%s7 + $0x68] sm:$0xf]
  %v2524 = vld [vmem:[%s7 + $0x6c] sm:$0xf]
  %v2525 = vld [vmem:[%s7 + $0x70] sm:$0xf]
  %v2526 = vld [vmem:[%s7 + $0x74] sm:$0xf]
  %v2527 = vld [vmem:[%s7 + $0x78] sm:$0xf]
  %v2528 = vld [vmem:[%s7 + $0x7c] sm:$0xf]
  %v2529 = vld [vmem:[%s7 + $0x80] sm:$0xf]
  %v2530 = vld [vmem:[%s7 + $0x84] sm:$0xf]
  %v2531 = vld [vmem:[%s7 + $0x88] sm:$0xf]
  %v2532 = vld [vmem:[%s7 + $0x8c] sm:$0xf]
  %v2533 = vld [vmem:[%s7 + $0x90] sm:$0xf]
  %v2534 = vld [vmem:[%s7 + $0x94] sm:$0xf]
  %v2535 = vld [vmem:[%s7 + $0x98] sm:$0xf]
  %v2536 = vld [vmem:[%s7 + $0x9c] sm:$0xf]
  %v2537 = vld [vmem:[%s7 + $0xa0] sm:$0xf]
  %v2538 = vld [vmem:[%s7 + $0xa4] sm:$0xf]
  %v2539 = vld [vmem:[%s7 + $0xa8] sm:$0xf]
  %v2540 = vld [vmem:[%s7 + $0xac] sm:$0xf]
  %v2541 = vld [vmem:[%s7 + $0xb0] sm:$0xf]
  %v2542 = vld [vmem:[%s7 + $0xb4] sm:$0xf]
  %v2543 = vld [vmem:[%s7 + $0xb8] sm:$0xf]
  %v2544 = vld [vmem:[%s7 + $0xbc] sm:$0xf]
  %v2545 = vld [vmem:[%s7 + $0xc0] sm:$0xf]
  %v2546 = vld [vmem:[%s7 + $0xc4] sm:$0xf]
  %v2547 = vld [vmem:[%s7 + $0xc8] sm:$0xf]
  %v2548 = vld [vmem:[%s7 + $0xcc] sm:$0xf]
  %v2549 = vld [vmem:[%s7 + $0xd0] sm:$0xf]
  %v2550 = vld [vmem:[%s7 + $0xd4] sm:$0xf]
  %v2551 = vld [vmem:[%s7 + $0xd8] sm:$0xf]
  %v2552 = vld [vmem:[%s7 + $0xdc] sm:$0xf]
  %v2553 = vld [vmem:[%s7 + $0xe0] sm:$0xf]
  %v2554 = vld [vmem:[%s7 + $0xe4] sm:$0xf]
  %v2555 = vld [vmem:[%s7 + $0xe8] sm:$0xf]
  %v2556 = vld [vmem:[%s7 + $0xec] sm:$0xf]
  %v2557 = vld [vmem:[%s7 + $0xf0] sm:$0xf]
  %v2558 = vld [vmem:[%s7 + $0xf4] sm:$0xf]
  %v2559 = vld [vmem:[%s7 + $0xf8] sm:$0xf]
  %v2560 = vld [vmem:[%s7 + $0xfc] sm:$0xf]
  %v2561 = vld [vmem:[%s8] sm:$0x1]
  %v2563 = vlaneseq
  %v2564 = vshrl.u32 %v2563, 7
  %v2565 = vsub.s32 0, %v2564
  %v2566 = vrot.slane %v2561, %v2565
  %v2632 = vunpack.c.l.b16 %v2497
  %v2633 = vunpack.c.l.b16 %v2498
  %v2634 = vunpack.c.l.b16 %v2499
  %v2635 = vunpack.c.l.b16 %v2500
  %v2636 = vunpack.c.l.b16 %v2501
  %v2637 = vunpack.c.l.b16 %v2502
  %v2638 = vunpack.c.l.b16 %v2503
  %v2639 = vunpack.c.l.b16 %v2504
  %v2640 = vunpack.c.l.b16 %v2505
  %v2641 = vunpack.c.l.b16 %v2506
  %v2642 = vunpack.c.l.b16 %v2507
  %v2643 = vunpack.c.l.b16 %v2508
  %v2644 = vunpack.c.l.b16 %v2509
  %v2645 = vunpack.c.l.b16 %v2510
  %v2646 = vunpack.c.l.b16 %v2511
  %v2647 = vunpack.c.l.b16 %v2512
  %v2648 = vunpack.c.l.b16 %v2513
  %v2649 = vunpack.c.l.b16 %v2514
  %v2650 = vunpack.c.l.b16 %v2515
  %v2651 = vunpack.c.l.b16 %v2516
  %v2652 = vunpack.c.l.b16 %v2517
  %v2653 = vunpack.c.l.b16 %v2518
  %v2654 = vunpack.c.l.b16 %v2519
  %v2655 = vunpack.c.l.b16 %v2520
  %v2656 = vunpack.c.l.b16 %v2521
  %v2657 = vunpack.c.l.b16 %v2522
  %v2658 = vunpack.c.l.b16 %v2523
  %v2659 = vunpack.c.l.b16 %v2524
  %v2660 = vunpack.c.l.b16 %v2525
  %v2661 = vunpack.c.l.b16 %v2526
  %v2662 = vunpack.c.l.b16 %v2527
  %v2663 = vunpack.c.l.b16 %v2528
  %v2664 = vunpack.c.l.b16 %v2529
  %v2665 = vunpack.c.l.b16 %v2530
  %v2666 = vunpack.c.l.b16 %v2531
  %v2667 = vunpack.c.l.b16 %v2532
  %v2668 = vunpack.c.l.b16 %v2533
  %v2669 = vunpack.c.l.b16 %v2534
  %v2670 = vunpack.c.l.b16 %v2535
  %v2671 = vunpack.c.l.b16 %v2536
  %v2672 = vunpack.c.l.b16 %v2537
  %v2673 = vunpack.c.l.b16 %v2538
  %v2674 = vunpack.c.l.b16 %v2539
  %v2675 = vunpack.c.l.b16 %v2540
  %v2676 = vunpack.c.l.b16 %v2541
  %v2677 = vunpack.c.l.b16 %v2542
  %v2678 = vunpack.c.l.b16 %v2543
  %v2679 = vunpack.c.l.b16 %v2544
  %v2680 = vunpack.c.l.b16 %v2545
  %v2681 = vunpack.c.l.b16 %v2546
  %v2682 = vunpack.c.l.b16 %v2547
  %v2683 = vunpack.c.l.b16 %v2548
  %v2684 = vunpack.c.l.b16 %v2549
  %v2685 = vunpack.c.l.b16 %v2550
  %v2686 = vunpack.c.l.b16 %v2551
  %v2687 = vunpack.c.l.b16 %v2552
  %v2688 = vunpack.c.l.b16 %v2553
  %v2689 = vunpack.c.l.b16 %v2554
  %v2690 = vunpack.c.l.b16 %v2555
  %v2691 = vunpack.c.l.b16 %v2556
  %v2692 = vunpack.c.l.b16 %v2557
  %v2693 = vunpack.c.l.b16 %v2558
  %v2694 = vunpack.c.l.b16 %v2559
  %v2695 = vunpack.c.l.b16 %v2560
  %v2696 = vpack.c.b16 %v2633, %v2632
  %v2697 = vpack.c.b16 %v2635, %v2634
  %v2698 = vpack.c.b16 %v2637, %v2636
  %v2699 = vpack.c.b16 %v2639, %v2638
  %v2700 = vpack.c.b16 %v2641, %v2640
  %v2701 = vpack.c.b16 %v2643, %v2642
  %v2702 = vpack.c.b16 %v2645, %v2644
  %v2703 = vpack.c.b16 %v2647, %v2646
  %v2704 = vpack.c.b16 %v2649, %v2648
  %v2705 = vpack.c.b16 %v2651, %v2650
  %v2706 = vpack.c.b16 %v2653, %v2652
  %v2707 = vpack.c.b16 %v2655, %v2654
  %v2708 = vpack.c.b16 %v2657, %v2656
  %v2709 = vpack.c.b16 %v2659, %v2658
  %v2710 = vpack.c.b16 %v2661, %v2660
  %v2711 = vpack.c.b16 %v2663, %v2662
  %v2712 = vpack.c.b16 %v2665, %v2664
  %v2713 = vpack.c.b16 %v2667, %v2666
  %v2714 = vpack.c.b16 %v2669, %v2668
  %v2715 = vpack.c.b16 %v2671, %v2670
  %v2716 = vpack.c.b16 %v2673, %v2672
  %v2717 = vpack.c.b16 %v2675, %v2674
  %v2718 = vpack.c.b16 %v2677, %v2676
  %v2719 = vpack.c.b16 %v2679, %v2678
  %v2720 = vpack.c.b16 %v2681, %v2680
  %v2721 = vpack.c.b16 %v2683, %v2682
  %v2722 = vpack.c.b16 %v2685, %v2684
  %v2723 = vpack.c.b16 %v2687, %v2686
  %v2724 = vpack.c.b16 %v2689, %v2688
  %v2725 = vpack.c.b16 %v2691, %v2690
  %v2726 = vpack.c.b16 %v2693, %v2692
  %v2727 = vpack.c.b16 %v2695, %v2694
  %2760 = vmatprep.subr.bf16.mxu0 0
  %2761 = vmatpush1.bf16.msra.mxu0 %v2696
  %2762 = vmatprep.subr.bf16.mxu0 0
  %2763 = vmatpush1.bf16.msra.mxu0 %v2697
  %2764 = vmatprep.subr.bf16.mxu0 0
  %2765 = vmatpush1.bf16.msra.mxu0 %v2698
  %2766 = vmatprep.subr.bf16.mxu0 0
  %2767 = vmatpush1.bf16.msra.mxu0 %v2699
  %2768 = vmatprep.subr.bf16.mxu0 0
  %2769 = vmatpush1.bf16.msra.mxu0 %v2700
  %2770 = vmatprep.subr.bf16.mxu0 0
  %2771 = vmatpush1.bf16.msra.mxu0 %v2701
  %2772 = vmatprep.subr.bf16.mxu0 0
  %2773 = vmatpush1.bf16.msra.mxu0 %v2702
  %2774 = vmatprep.subr.bf16.mxu0 0
  %2775 = vmatpush1.bf16.msra.mxu0 %v2703
  %2776 = vmatprep.subr.bf16.mxu0 0
  %2777 = vmatpush1.bf16.msra.mxu0 %v2704
  %2778 = vmatprep.subr.bf16.mxu0 0
  %2779 = vmatpush1.bf16.msra.mxu0 %v2705
  %2780 = vmatprep.subr.bf16.mxu0 0
  %2781 = vmatpush1.bf16.msra.mxu0 %v2706
  %2782 = vmatprep.subr.bf16.mxu0 0
  %2783 = vmatpush1.bf16.msra.mxu0 %v2707
  %2784 = vmatprep.subr.bf16.mxu0 0
  %2785 = vmatpush1.bf16.msra.mxu0 %v2708
  %2786 = vmatprep.subr.bf16.mxu0 0
  %2787 = vmatpush1.bf16.msra.mxu0 %v2709
  %2788 = vmatprep.subr.bf16.mxu0 0
  %2789 = vmatpush1.bf16.msra.mxu0 %v2710
  %2790 = vmatprep.subr.bf16.mxu0 0
  %2791 = vmatpush1.bf16.msra.mxu0 %v2711
  %2792 = vmatprep.mubr.bf16.mxu0 %v2494
  %2793 = vmatmul.mubr.bf16.gmra.mrb[0].mxu0 %v2493
  %v2794 = vpop.f32.mrb[0].mxu0
  %v2795 = vadd.f32 %v2566, %v2794
  %v2796 = vpop.f32.mrb[0].mxu0
  %v2797 = vpop.f32.mrb[0].mxu0
  %v2798 = vpop.f32.mrb[0].mxu0
  %2799 = vdwg.mxu0
  %2800 = vmatprep.subr.bf16.mxu0 0
  %2801 = vmatpush1.bf16.msra.mxu0 %v2712
  %2802 = vmatprep.subr.bf16.mxu0 0
  %2803 = vmatpush1.bf16.msra.mxu0 %v2713
  %2804 = vmatprep.subr.bf16.mxu0 0
  %2805 = vmatpush1.bf16.msra.mxu0 %v2714
  %2806 = vmatprep.subr.bf16.mxu0 0
  %2807 = vmatpush1.bf16.msra.mxu0 %v2715
  %2808 = vmatprep.subr.bf16.mxu0 0
  %2809 = vmatpush1.bf16.msra.mxu0 %v2716
  %2810 = vmatprep.subr.bf16.mxu0 0
  %2811 = vmatpush1.bf16.msra.mxu0 %v2717
  %2812 = vmatprep.subr.bf16.mxu0 0
  %2813 = vmatpush1.bf16.msra.mxu0 %v2718
  %2814 = vmatprep.subr.bf16.mxu0 0
  %2815 = vmatpush1.bf16.msra.mxu0 %v2719
  %2816 = vmatprep.subr.bf16.mxu0 0
  %2817 = vmatpush1.bf16.msra.mxu0 %v2720
  %2818 = vmatprep.subr.bf16.mxu0 0
  %2819 = vmatpush1.bf16.msra.mxu0 %v2721
  %2820 = vmatprep.subr.bf16.mxu0 0
  %2821 = vmatpush1.bf16.msra.mxu0 %v2722
  %2822 = vmatprep.subr.bf16.mxu0 0
  %2823 = vmatpush1.bf16.msra.mxu0 %v2723
  %2824 = vmatprep.subr.bf16.mxu0 0
  %2825 = vmatpush1.bf16.msra.mxu0 %v2724
  %2826 = vmatprep.subr.bf16.mxu0 0
  %2827 = vmatpush1.bf16.msra.mxu0 %v2725
  %2828 = vmatprep.subr.bf16.mxu0 0
  %2829 = vmatpush1.bf16.msra.mxu0 %v2726
  %2830 = vmatprep.subr.bf16.mxu0 0
  %2831 = vmatpush1.bf16.msra.mxu0 %v2727
  %2832 = vmatprep.mubr.bf16.mxu0 %v2496
  %2833 = vmatmul.mubr.bf16.gmra.mrb[0].mxu0 %v2495
  %v2834 = vpop.f32.mrb[0].mxu0
  %v2835 = vadd.f32 %v2795, %v2834
  %v2836 = vpop.f32.mrb[0].mxu0
  %v2837 = vpop.f32.mrb[0].mxu0
  %v2838 = vpop.f32.mrb[0].mxu0
  %2839 = vdwg.mxu0
  %v2840 = vmax.f32 %v2835, 0.0
  %v2841 = vpack.c.bf16 %v2840, %v2840
  %v2842 = vld [vmem:[%s9] sm:$0xf]
  %v2843 = vld [vmem:[%s9 + $0x4] sm:$0xf]
  %v2844 = vld [vmem:[%s9 + $0x8] sm:$0xf]
  %v2845 = vld [vmem:[%s9 + $0xc] sm:$0xf]
  %v2846 = vld [vmem:[%s9 + $0x10] sm:$0xf]
  %v2847 = vld [vmem:[%s9 + $0x14] sm:$0xf]
  %v2848 = vld [vmem:[%s9 + $0x18] sm:$0xf]
  %v2849 = vld [vmem:[%s9 + $0x1c] sm:$0xf]
  %v2850 = vld [vmem:[%s9 + $0x20] sm:$0xf]
  %v2851 = vld [vmem:[%s9 + $0x24] sm:$0xf]
  %v2852 = vld [vmem:[%s9 + $0x28] sm:$0xf]
  %v2853 = vld [vmem:[%s9 + $0x2c] sm:$0xf]
  %v2854 = vld [vmem:[%s9 + $0x30] sm:$0xf]
  %v2855 = vld [vmem:[%s9 + $0x34] sm:$0xf]
  %v2856 = vld [vmem:[%s9 + $0x38] sm:$0xf]
  %v2857 = vld [vmem:[%s9 + $0x3c] sm:$0xf]
  %v2858 = vld [vmem:[%s10] sm:$0x1]
  %v2860 = vlaneseq
  %v2861 = vshrl.u32 %v2860, 7
  %v2862 = vsub.s32 0, %v2861
  %v2863 = vrot.slane %v2858, %v2862
  %v2881 = vunpack.c.l.b16 %v2842
  %v2882 = vunpack.c.l.b16 %v2843
  %v2883 = vunpack.c.l.b16 %v2844
  %v2884 = vunpack.c.l.b16 %v2845
  %v2885 = vunpack.c.l.b16 %v2846
  %v2886 = vunpack.c.l.b16 %v2847
  %v2887 = vunpack.c.l.b16 %v2848
  %v2888 = vunpack.c.l.b16 %v2849
  %v2889 = vunpack.c.l.b16 %v2850
  %v2890 = vunpack.c.l.b16 %v2851
  %v2891 = vunpack.c.l.b16 %v2852
  %v2892 = vunpack.c.l.b16 %v2853
  %v2893 = vunpack.c.l.b16 %v2854
  %v2894 = vunpack.c.l.b16 %v2855
  %v2895 = vunpack.c.l.b16 %v2856
  %v2896 = vunpack.c.l.b16 %v2857
  %v2897 = vpack.c.b16 %v2882, %v2881
  %v2898 = vpack.c.b16 %v2884, %v2883
  %v2899 = vpack.c.b16 %v2886, %v2885
  %v2900 = vpack.c.b16 %v2888, %v2887
  %v2901 = vpack.c.b16 %v2890, %v2889
  %v2902 = vpack.c.b16 %v2892, %v2891
  %v2903 = vpack.c.b16 %v2894, %v2893
  %v2904 = vpack.c.b16 %v2896, %v2895
  %2913 = vmatprep.subr.bf16.mxu0 0
  %2914 = vmatpush1.bf16.msra.mxu0 %v2897
  %2915 = vmatprep.subr.bf16.mxu0 0
  %2916 = vmatpush1.bf16.msra.mxu0 %v2898
  %2917 = vmatprep.subr.bf16.mxu0 0
  %2918 = vmatpush1.bf16.msra.mxu0 %v2899
  %2919 = vmatprep.subr.bf16.mxu0 0
  %2920 = vmatpush1.bf16.msra.mxu0 %v2900
  %2921 = vmatprep.subr.bf16.mxu0 0
  %2922 = vmatpush1.bf16.msra.mxu0 %v2901
  %2923 = vmatprep.subr.bf16.mxu0 0
  %2924 = vmatpush1.bf16.msra.mxu0 %v2902
  %2925 = vmatprep.subr.bf16.mxu0 0
  %2926 = vmatpush1.bf16.msra.mxu0 %v2903
  %2927 = vmatprep.subr.bf16.mxu0 0
  %2928 = vmatpush1.bf16.msra.mxu0 %v2904
  %2929 = vmatprep.subr.bf16.mxu0 0
  %2930 = vmatpush1.bf16.msra.mxu0 0
  %2931 = vmatprep.subr.bf16.mxu0 0
  %2932 = vmatpush1.bf16.msra.mxu0 0
  %2933 = vmatprep.subr.bf16.mxu0 0
  %2934 = vmatpush1.bf16.msra.mxu0 0
  %2935 = vmatprep.subr.bf16.mxu0 0
  %2936 = vmatpush1.bf16.msra.mxu0 0
  %2937 = vmatprep.subr.bf16.mxu0 0
  %2938 = vmatpush1.bf16.msra.mxu0 0
  %2939 = vmatprep.subr.bf16.mxu0 0
  %2940 = vmatpush1.bf16.msra.mxu0 0
  %2941 = vmatprep.subr.bf16.mxu0 0
  %2942 = vmatpush1.bf16.msra.mxu0 0
  %2943 = vmatprep.subr.bf16.mxu0 0
  %2944 = vmatpush1.bf16.msra.mxu0 0
  %2945 = vmatprep.mubr.bf16.mxu0 0
  %2946 = vmatmul.mubr.bf16.gmra.mrb[0].mxu0 %v2841
  %v2947 = vpop.f32.mrb[0].mxu0
  %v2948 = vadd.f32 %v2863, %v2947
  %v2949 = vpop.f32.mrb[0].mxu0
  %v2950 = vpop.f32.mrb[0].mxu0
  %v2951 = vpop.f32.mrb[0].mxu0
  %2952 = vdwg.mxu0
  %v2953 = vpack.c.bf16 %v2948, %v2948
  %2954 = vst [vmem:[%s11] sm:$0xf] %v2953
  // Predicated region
  $region46: #{_net_forward_impl.1} parent=0 // pred_check
    _
  $region47: #{_net_forward_impl.1} parent=0 // pred_check_branch
    %2956 = sbr.rel (0) target = $region49
  $region48: #{_net_forward_impl.1} parent=0 // pred_region
    _
  $region49: #{_net_forward_impl.1} parent=0 // pred_fallthru
    _
  // Predicated region
  $region50: #{_net_forward_impl.1} parent=0 // pred_check
    _
  $region51: #{_net_forward_impl.1} parent=0 // pred_check_branch
    %2958 = sbr.rel (0) target = $region53
  $region52: #{_net_forward_impl.1} parent=0 // pred_region
    _
  $region53: #{_net_forward_impl.1} parent=0 // pred_fallthru
    _

</llo_original>
